<compile_context>
chip_gen: v6e
topology: v6e:2x2x1
jax: 0.10.0
libtpu: 0.0.40
codegen_flags: <defaults>
</compile_context>

<pallas_src>
import functools

import jax
import jax.numpy as jnp
from jax.experimental import pallas as pl
from jax.experimental.pallas import tpu as pltpu

BN_EPS = 1e-5


def _encoder_head_kernel(x_ref, w_ref, p_ref, o_ref):
    """Linear(2048 -> E_tile, int8 weights, no bias) + BatchNorm1d(E_tile)."""
    # In-kernel casts (hidden under the weight DMA): f32 -> bf16 activations,
    # int8 -> bf16 weights (exact, |q| <= 127).
    x = x_ref[...].astype(jnp.bfloat16)
    w = w_ref[...].astype(jnp.bfloat16)

    # MXU matmul on the *unscaled* int8 columns, f32 accumulation.
    y = jnp.dot(x, w, preferred_element_type=jnp.float32)       # (B, E_tile)

    # BatchNorm1d (training-mode): batch mean / biased batch variance.
    # Per-column dequant scale s cancels because we use eps_adj = eps / s^2:
    #   (s*diff) * rsqrt(s^2*var + eps) == diff * rsqrt(var + eps/s^2)
    mean = jnp.mean(y, axis=0, keepdims=True)                    # (1, E_tile)
    diff = y - mean
    var = jnp.mean(diff * diff, axis=0, keepdims=True)           # (1, E_tile)

    eps_adj = p_ref[0:1, :]                                      # eps / s^2
    gamma = p_ref[1:2, :]
    beta = p_ref[2:3, :]

    col_scale = gamma * jax.lax.rsqrt(var + eps_adj)             # gamma folded in
    o_ref[...] = diff * col_scale + beta


def _default_e_tile(E):
    """v7x has 2 TensorCores -> shard E tiles across them; else single block."""
    try:
        kind = jax.devices()[0].device_kind.lower()
    except Exception:
        kind = ""
    if ("v7" in kind or "tpu7" in kind) and E > 128 and E % 128 == 0:
        return 128
    return E


@functools.partial(jax.jit, static_argnames=("e_tile",))
def _encoder_head(features, w_q_int8, params, *, e_tile):
    B = features.shape[0]
    x = features.reshape(B, -1)            # (B, 2048) f32; cast happens in-kernel
    K = x.shape[1]
    E = w_q_int8.shape[1]
    n_e = E // e_tile

    return pl.pallas_call(
        _encoder_head_kernel,
        out_shape=jax.ShapeDtypeStruct((B, E), jnp.float32),
        grid_spec=pltpu.PrefetchScalarGridSpec(
            num_scalar_prefetch=0,
            grid=(n_e,),
            in_specs=[
                pl.BlockSpec((B, K), lambda e: (0, 0)),          # features (f32)
                pl.BlockSpec((K, e_tile), lambda e: (0, e)),     # W^T      (int8)
                pl.BlockSpec((3, e_tile), lambda e: (0, e)),     # [eps_adj; gamma; beta]
            ],
            out_specs=pl.BlockSpec((B, e_tile), lambda e: (0, e)),
        ),
        compiler_params=pltpu.CompilerParams(
            dimension_semantics=("parallel",)),
    )(x, w_q_int8, params)


def encoder_cnn_head(features, w_q_int8, params, e_tile=None):
    """features: (B, 2048, 1, 1) f32 -> (B, E) f32, E = w_q_int8.shape[1]."""
    if e_tile is None:
        e_tile = _default_e_tile(w_q_int8.shape[1])
    return _encoder_head(features, w_q_int8, params, e_tile=e_tile)


def quantize_linear_weight(w_t_f32):
    """(K, E) f32 -> (int8 weight (K, E), per-column scale (1, E))."""
    absmax = jnp.max(jnp.abs(w_t_f32), axis=0, keepdims=True)    # (1, E)
    scale = jnp.maximum(absmax, 1e-12) / 127.0
    w_q = jnp.round(w_t_f32 / scale).astype(jnp.int8)
    return w_q, scale


def _reference(features, w_q_int8, scale, bias, gamma, beta):
    """Pure-JAX reference: dequantized Linear (with bias) + train-mode BN."""
    x = features.reshape(features.shape[0], -1)
    x = x.astype(jnp.bfloat16).astype(jnp.float32)               # same activation quant
    w = w_q_int8.astype(jnp.float32) * scale                     # dequantized (K, E)
    y = jnp.dot(x, w, preferred_element_type=jnp.float32,
                precision=jax.lax.Precision.HIGHEST) + bias
    mean = jnp.mean(y, axis=0, keepdims=True)
    var = jnp.mean((y - mean) ** 2, axis=0, keepdims=True)
    return (y - mean) * jax.lax.rsqrt(var + BN_EPS) * gamma + beta


if __name__ == "__main__":
    # Small, deterministic synthetic setup (K=2048 fixed by the module).
    embed_size = 128
    E = embed_size + 256          # 384 = 3 * 128 lanes
    B, K = 8, 2048                # resnet152 (minus fc) emits (B, 2048, 1, 1)

    key = jax.random.PRNGKey(0)
    k_feat, k_w, k_b, k_g, k_beta = jax.random.split(key, 5)

    # Stand-in for self.resnet(images) output under torch.no_grad().
    features = jax.random.normal(k_feat, (B, K, 1, 1), dtype=jnp.float32)

    # nn.Linear(2048, E): weight (E, 2048) -> pre-transposed (K, E), int8-quantized.
    w = jax.random.normal(k_w, (E, K), dtype=jnp.float32) * (1.0 / jnp.sqrt(K))
    w_q, w_scale = quantize_linear_weight(w.T)                   # (K, E) int8, (1, E)
    bias = jax.random.normal(k_b, (1, E), dtype=jnp.float32) * 0.01

    # nn.BatchNorm1d(E): gamma init 1, beta init 0 (perturbed to be non-trivial).
    gamma = 1.0 + 0.1 * jax.random.normal(k_g, (1, E), dtype=jnp.float32)
    beta = 0.1 * jax.random.normal(k_beta, (1, E), dtype=jnp.float32)

    # Packed per-column params: [eps / scale^2 ; gamma ; beta]  -> (3, E) f32.
    eps_adj = BN_EPS / (w_scale * w_scale)
    params = jnp.concatenate([eps_adj, gamma, beta], axis=0)

    out = encoder_cnn_head(features, w_q, params)
    out = jax.block_until_ready(out)

    ref = _reference(features, w_q, w_scale, bias, gamma, beta)
    assert out.shape == (B, E) and out.dtype == jnp.float32
    assert jnp.allclose(out, ref, atol=1e-3, rtol=1e-3), "mismatch vs reference"

    print("KERNEL_OK")
</pallas_src>

<mosaic_0001>
module attributes {stable_mosaic.version = 11 : i64} {
  func.func @_encoder_head_kernel(%arg0: i32, %arg1: memref<8x2048xf32, #tpu.memory_space<vmem>>, %arg2: memref<2048x384xi8, #tpu.memory_space<vmem>>, %arg3: memref<3x384xf32, #tpu.memory_space<vmem>>, %arg4: memref<8x384xf32, #tpu.memory_space<vmem>>) attributes {dimension_semantics = [#tpu.dimension_semantics<parallel>], iteration_bounds = array<i64: 1>, scalar_prefetch = 0 : i64, scratch_operands = 0 : i64, tpu.core_type = #tpu.core_type<tc>, window_params = [{pipeline_mode = #tpu.pipeline_mode<synchronous>, transform_indices = @transform_0, window_bounds = array<i64: 8, 2048>}, {transform_indices = @transform_1, window_bounds = array<i64: 2048, 384>}, {transform_indices = @transform_2, window_bounds = array<i64: 3, 384>}, {transform_indices = @transform_3, window_bounds = array<i64: 8, 384>}]} {
    %c0 = arith.constant 0 : index
    %c0_0 = arith.constant 0 : index
    %0 = vector.load %arg1[%c0, %c0_0] : memref<8x2048xf32, #tpu.memory_space<vmem>>, vector<8x2048xf32>
    %1 = arith.truncf %0 : vector<8x2048xf32> to vector<8x2048xbf16>
    %c0_1 = arith.constant 0 : index
    %c0_2 = arith.constant 0 : index
    %2 = vector.load %arg2[%c0_1, %c0_2] : memref<2048x384xi8, #tpu.memory_space<vmem>>, vector<2048x384xi8>
    %3 = arith.sitofp %2 : vector<2048x384xi8> to vector<2048x384xbf16>
    %cst = arith.constant dense<0.000000e+00> : vector<8x384xf32>
    %4 = tpu.matmul %1, %3, %cst {dimension_numbers = #tpu.dot_dimension_numbers<[1], [0], [0], [1], [0, 0, 1, 1], [], []>} : vector<8x2048xbf16>, vector<2048x384xbf16>, vector<8x384xf32> -> vector<8x384xf32>
    %cst_3 = arith.constant dense<0.000000e+00> : vector<384xf32>
    %5 = vector.multi_reduction <add>, %4, %cst_3 [0] : vector<8x384xf32> to vector<384xf32>
    %6 = vector.shape_cast %5 : vector<384xf32> to vector<1x384xf32>
    %cst_4 = arith.constant 8.000000e+00 : f32
    %7 = vector.broadcast %cst_4 : f32 to vector<1x384xf32>
    %8 = arith.divf %6, %7 : vector<1x384xf32>
    %9 = vector.broadcast %8 : vector<1x384xf32> to vector<8x384xf32>
    %10 = arith.subf %4, %9 : vector<8x384xf32>
    %11 = arith.mulf %10, %10 : vector<8x384xf32>
    %cst_5 = arith.constant dense<0.000000e+00> : vector<384xf32>
    %12 = vector.multi_reduction <add>, %11, %cst_5 [0] : vector<8x384xf32> to vector<384xf32>
    %13 = vector.shape_cast %12 : vector<384xf32> to vector<1x384xf32>
    %cst_6 = arith.constant 8.000000e+00 : f32
    %14 = vector.broadcast %cst_6 : f32 to vector<1x384xf32>
    %15 = arith.divf %13, %14 : vector<1x384xf32>
    %c0_7 = arith.constant 0 : index
    %c0_8 = arith.constant 0 : index
    %16 = vector.load %arg3[%c0_7, %c0_8] : memref<3x384xf32, #tpu.memory_space<vmem>>, vector<1x384xf32>
    %c1 = arith.constant 1 : index
    %c0_9 = arith.constant 0 : index
    %17 = vector.load %arg3[%c1, %c0_9] : memref<3x384xf32, #tpu.memory_space<vmem>>, vector<1x384xf32>
    %c2 = arith.constant 2 : index
    %c0_10 = arith.constant 0 : index
    %18 = vector.load %arg3[%c2, %c0_10] : memref<3x384xf32, #tpu.memory_space<vmem>>, vector<1x384xf32>
    %19 = arith.addf %15, %16 : vector<1x384xf32>
    %20 = math.rsqrt %19 : vector<1x384xf32>
    %21 = arith.mulf %17, %20 : vector<1x384xf32>
    %22 = vector.broadcast %21 : vector<1x384xf32> to vector<8x384xf32>
    %23 = arith.mulf %10, %22 : vector<8x384xf32>
    %24 = vector.broadcast %18 : vector<1x384xf32> to vector<8x384xf32>
    %25 = arith.addf %23, %24 : vector<8x384xf32>
    %c0_11 = arith.constant 0 : index
    %c0_12 = arith.constant 0 : index
    %26 = vector.load %arg4[%c0_11, %c0_12] : memref<8x384xf32, #tpu.memory_space<vmem>>, vector<8x384xf32>
    tpu.vector_store %arg4[%c0_11, %c0_12], %25 {strides = array<i32>} : memref<8x384xf32, #tpu.memory_space<vmem>>, vector<8x384xf32>,
    return
  }
  func.func @transform_0(%arg0: i32) -> (i32, i32) {
    %c0_i32 = arith.constant 0 : i32
    %c0_i32_0 = arith.constant 0 : i32
    %c0_i32_1 = arith.constant 0 : i32
    return %c0_i32, %c0_i32_0 : i32, i32
  }
  func.func @transform_1(%arg0: i32) -> (i32, i32) {
    %c0_i32 = arith.constant 0 : i32
    %c0_i32_0 = arith.constant 0 : i32
    return %c0_i32, %arg0 : i32, i32
  }
  func.func @transform_2(%arg0: i32) -> (i32, i32) {
    %c0_i32 = arith.constant 0 : i32
    %c0_i32_0 = arith.constant 0 : i32
    return %c0_i32, %arg0 : i32, i32
  }
  func.func @transform_3(%arg0: i32) -> (i32, i32) {
    %c0_i32 = arith.constant 0 : i32
    %c0_i32_0 = arith.constant 0 : i32
    return %c0_i32, %arg0 : i32, i32
  }
}

</mosaic_0001>

<llo_original>
// kernel: _encoder_head.1
$region0: #{_encoder_head.1}
  #allocation0 [shape = 'u32[]', space=smem, size = 0x4, offset = 0x4, fixed_abs, tag = 'smem constant byte address 0x4 - core index']
  #allocation1 [shape = 'u32[144,128]{1,0:T(1,128)}', space=vmem, size = 0x12000, scoped, tag = 'internal scratch']
  %s0 = inlined_call_operand.vmem [shape: f32[8,2048], index: 0, kind: input, shape index: {}]
  %s1 = inlined_call_operand.hbm [shape: s8[2048,384], index: 1, kind: input, shape index: {}]
  %s2 = inlined_call_operand.vmem [shape: f32[3,384], index: 2, kind: input, shape index: {}]
  %s3 = inlined_call_operand.hbm [shape: f32[8,384], index: 3, kind: output, shape index: {}]
  %s4 = sld [smem:[#allocation0]]
  $region26: #{_encoder_head.1} parent=0
    _
  %s6 = ssub.s32 1, %s4
  %s7 = scalar_select 0, %s6, %s4
  $region1: #{_encoder_head.1} parent=0
    #allocation2 [shape = 'u8[786432]{0}', space=vmem, size = 0xc0000, scoped, tag = 'input window, operand 1, single buffered']
    #allocation3 [shape = 's32[1]{0}', space=sflag, size = 0x4, scoped, tag = 'scoped memory for _encoder_head.1']
    #allocation4 [shape = 's32[1]{0}', space=sflag, size = 0x4, scoped, tag = 'scoped memory for _encoder_head.1']
    #allocation5 [shape = 'u8[12288]{0}', space=vmem, size = 0x3000, scoped, tag = 'output window, operand 0, single buffered']
    %8 = vsyncpa [#allocation3], 0
    %9 = vsyncpa [#allocation4], 0
    // Predicated region
    $region2: #{_encoder_head.1} parent=1 // pred_check
      _
    $region3: #{_encoder_head.1} parent=1 // pred_check_branch
      %11 = sbr.rel (0) target = $region5
    $region4: #{_encoder_head.1} parent=1 // pred_region
      _
    $region5: #{_encoder_head.1} parent=1 // pred_fallthru
      _
    // Predicated region
    $region6: #{_encoder_head.1} parent=1 // pred_check
      _
    $region7: #{_encoder_head.1} parent=1 // pred_check_branch
      %13 = sbr.rel (0) target = $region9
    $region8: #{_encoder_head.1} parent=1 // pred_region
      %s15 = ssub.s32 24576, 24576
      %16 = vsyncadd [#allocation3], %s15
      %s17 = sshll.u32 [#allocation2], 4
      %s18 = int_to_ptr.vmem [resolvable:$true] %s17
      %23 = dma.hbm_to_vmem [thread:$0]  %s1, 24576, %s18, [#allocation3], 384, 384, 24
    $region9: #{_encoder_head.1} parent=1 // pred_fallthru
      _
    // Predicated region
    $region10: #{_encoder_head.1} parent=1 // pred_check
      _
    $region11: #{_encoder_head.1} parent=1 // pred_check_branch
      %25 = sbr.rel (0) target = $region13
    $region12: #{_encoder_head.1} parent=1 // pred_region
      _
    $region13: #{_encoder_head.1} parent=1 // pred_fallthru
      _
    // Predicated region
    $region14: #{_encoder_head.1} parent=1 // pred_check
      _
    $region15: #{_encoder_head.1} parent=1 // pred_check_branch
      %27 = sbr.rel (0) target = $region17
    $region16: #{_encoder_head.1} parent=1 // pred_region
      %28 = dma.done [#allocation3], 24576
    $region17: #{_encoder_head.1} parent=1 // pred_fallthru
      _
    %v30 = vld [vmem:[%s0] sm:$0xff]
    %v31 = vld [vmem:[%s0 + $0x8] sm:$0xff]
    %v32 = vld [vmem:[%s0 + $0x10] sm:$0xff]
    %v33 = vld [vmem:[%s0 + $0x18] sm:$0xff]
    %v34 = vld [vmem:[%s0 + $0x20] sm:$0xff]
    %v35 = vld [vmem:[%s0 + $0x28] sm:$0xff]
    %v36 = vld [vmem:[%s0 + $0x30] sm:$0xff]
    %v37 = vld [vmem:[%s0 + $0x38] sm:$0xff]
    %v38 = vld [vmem:[%s0 + $0x40] sm:$0xff]
    %v39 = vld [vmem:[%s0 + $0x48] sm:$0xff]
    %v40 = vld [vmem:[%s0 + $0x50] sm:$0xff]
    %v41 = vld [vmem:[%s0 + $0x58] sm:$0xff]
    %v42 = vld [vmem:[%s0 + $0x60] sm:$0xff]
    %v43 = vld [vmem:[%s0 + $0x68] sm:$0xff]
    %v44 = vld [vmem:[%s0 + $0x70] sm:$0xff]
    %v45 = vld [vmem:[%s0 + $0x78] sm:$0xff]
    %v46 = vpack.c.bf16 %v30, %v30
    %v47 = vpack.c.bf16 %v31, %v31
    %v48 = vpack.c.bf16 %v32, %v32
    %v49 = vpack.c.bf16 %v33, %v33
    %v50 = vpack.c.bf16 %v34, %v34
    %v51 = vpack.c.bf16 %v35, %v35
    %v52 = vpack.c.bf16 %v36, %v36
    %v53 = vpack.c.bf16 %v37, %v37
    %v54 = vpack.c.bf16 %v38, %v38
    %v55 = vpack.c.bf16 %v39, %v39
    %v56 = vpack.c.bf16 %v40, %v40
    %v57 = vpack.c.bf16 %v41, %v41
    %v58 = vpack.c.bf16 %v42, %v42
    %v59 = vpack.c.bf16 %v43, %v43
    %v60 = vpack.c.bf16 %v44, %v44
    %v61 = vpack.c.bf16 %v45, %v45
    %v62 = vld [vmem:[#allocation2] sm:$0xff]
    %v63 = vld [vmem:[#allocation2 + $0x8] sm:$0xff]
    %v64 = vld [vmem:[#allocation2 + $0x10] sm:$0xff]
    %v65 = vld [vmem:[#allocation2 + $0x18] sm:$0xff]
    %v66 = vld [vmem:[#allocation2 + $0x20] sm:$0xff]
    %v67 = vld [vmem:[#allocation2 + $0x28] sm:$0xff]
    %v68 = vld [vmem:[#allocation2 + $0x30] sm:$0xff]
    %v69 = vld [vmem:[#allocation2 + $0x38] sm:$0xff]
    %v70 = vld [vmem:[#allocation2 + $0x40] sm:$0xff]
    %v71 = vld [vmem:[#allocation2 + $0x48] sm:$0xff]
    %v72 = vld [vmem:[#allocation2 + $0x50] sm:$0xff]
    %v73 = vld [vmem:[#allocation2 + $0x58] sm:$0xff]
    %v74 = vld [vmem:[#allocation2 + $0x60] sm:$0xff]
    %v75 = vld [vmem:[#allocation2 + $0x68] sm:$0xff]
    %v76 = vld [vmem:[#allocation2 + $0x70] sm:$0xff]
    %v77 = vld [vmem:[#allocation2 + $0x78] sm:$0xff]
    %v78 = vld [vmem:[#allocation2 + $0x80] sm:$0xff]
    %v79 = vld [vmem:[#allocation2 + $0x88] sm:$0xff]
    %v80 = vld [vmem:[#allocation2 + $0x90] sm:$0xff]
    %v81 = vld [vmem:[#allocation2 + $0x98] sm:$0xff]
    %v82 = vld [vmem:[#allocation2 + $0xa0] sm:$0xff]
    %v83 = vld [vmem:[#allocation2 + $0xa8] sm:$0xff]
    %v84 = vld [vmem:[#allocation2 + $0xb0] sm:$0xff]
    %v85 = vld [vmem:[#allocation2 + $0xb8] sm:$0xff]
    %v86 = vld [vmem:[#allocation2 + $0xc0] sm:$0xff]
    %v87 = vld [vmem:[#allocation2 + $0xc8] sm:$0xff]
    %v88 = vld [vmem:[#allocation2 + $0xd0] sm:$0xff]
    %v89 = vld [vmem:[#allocation2 + $0xd8] sm:$0xff]
    %v90 = vld [vmem:[#allocation2 + $0xe0] sm:$0xff]
    %v91 = vld [vmem:[#allocation2 + $0xe8] sm:$0xff]
    %v92 = vld [vmem:[#allocation2 + $0xf0] sm:$0xff]
    %v93 = vld [vmem:[#allocation2 + $0xf8] sm:$0xff]
    %v94 = vld [vmem:[#allocation2 + $0x100] sm:$0xff]
    %v95 = vld [vmem:[#allocation2 + $0x108] sm:$0xff]
    %v96 = vld [vmem:[#allocation2 + $0x110] sm:$0xff]
    %v97 = vld [vmem:[#allocation2 + $0x118] sm:$0xff]
    %v98 = vld [vmem:[#allocation2 + $0x120] sm:$0xff]
    %v99 = vld [vmem:[#allocation2 + $0x128] sm:$0xff]
    %v100 = vld [vmem:[#allocation2 + $0x130] sm:$0xff]
    %v101 = vld [vmem:[#allocation2 + $0x138] sm:$0xff]
    %v102 = vld [vmem:[#allocation2 + $0x140] sm:$0xff]
    %v103 = vld [vmem:[#allocation2 + $0x148] sm:$0xff]
    %v104 = vld [vmem:[#allocation2 + $0x150] sm:$0xff]
    %v105 = vld [vmem:[#allocation2 + $0x158] sm:$0xff]
    %v106 = vld [vmem:[#allocation2 + $0x160] sm:$0xff]
    %v107 = vld [vmem:[#allocation2 + $0x168] sm:$0xff]
    %v108 = vld [vmem:[#allocation2 + $0x170] sm:$0xff]
    %v109 = vld [vmem:[#allocation2 + $0x178] sm:$0xff]
    %v110 = vld [vmem:[#allocation2 + $0x180] sm:$0xff]
    %v111 = vld [vmem:[#allocation2 + $0x188] sm:$0xff]
    %v112 = vld [vmem:[#allocation2 + $0x190] sm:$0xff]
    %v113 = vld [vmem:[#allocation2 + $0x198] sm:$0xff]
    %v114 = vld [vmem:[#allocation2 + $0x1a0] sm:$0xff]
    %v115 = vld [vmem:[#allocation2 + $0x1a8] sm:$0xff]
    %v116 = vld [vmem:[#allocation2 + $0x1b0] sm:$0xff]
    %v117 = vld [vmem:[#allocation2 + $0x1b8] sm:$0xff]
    %v118 = vld [vmem:[#allocation2 + $0x1c0] sm:$0xff]
    %v119 = vld [vmem:[#allocation2 + $0x1c8] sm:$0xff]
    %v120 = vld [vmem:[#allocation2 + $0x1d0] sm:$0xff]
    %v121 = vld [vmem:[#allocation2 + $0x1d8] sm:$0xff]
    %v122 = vld [vmem:[#allocation2 + $0x1e0] sm:$0xff]
    %v123 = vld [vmem:[#allocation2 + $0x1e8] sm:$0xff]
    %v124 = vld [vmem:[#allocation2 + $0x1f0] sm:$0xff]
    %v125 = vld [vmem:[#allocation2 + $0x1f8] sm:$0xff]
    %v126 = vld [vmem:[#allocation2 + $0x200] sm:$0xff]
    %v127 = vld [vmem:[#allocation2 + $0x208] sm:$0xff]
    %v128 = vld [vmem:[#allocation2 + $0x210] sm:$0xff]
    %v129 = vld [vmem:[#allocation2 + $0x218] sm:$0xff]
    %v130 = vld [vmem:[#allocation2 + $0x220] sm:$0xff]
    %v131 = vld [vmem:[#allocation2 + $0x228] sm:$0xff]
    %v132 = vld [vmem:[#allocation2 + $0x230] sm:$0xff]
    %v133 = vld [vmem:[#allocation2 + $0x238] sm:$0xff]
    %v134 = vld [vmem:[#allocation2 + $0x240] sm:$0xff]
    %v135 = vld [vmem:[#allocation2 + $0x248] sm:$0xff]
    %v136 = vld [vmem:[#allocation2 + $0x250] sm:$0xff]
    %v137 = vld [vmem:[#allocation2 + $0x258] sm:$0xff]
    %v138 = vld [vmem:[#allocation2 + $0x260] sm:$0xff]
    %v139 = vld [vmem:[#allocation2 + $0x268] sm:$0xff]
    %v140 = vld [vmem:[#allocation2 + $0x270] sm:$0xff]
    %v141 = vld [vmem:[#allocation2 + $0x278] sm:$0xff]
    %v142 = vld [vmem:[#allocation2 + $0x280] sm:$0xff]
    %v143 = vld [vmem:[#allocation2 + $0x288] sm:$0xff]
    %v144 = vld [vmem:[#allocation2 + $0x290] sm:$0xff]
    %v145 = vld [vmem:[#allocation2 + $0x298] sm:$0xff]
    %v146 = vld [vmem:[#allocation2 + $0x2a0] sm:$0xff]
    %v147 = vld [vmem:[#allocation2 + $0x2a8] sm:$0xff]
    %v148 = vld [vmem:[#allocation2 + $0x2b0] sm:$0xff]
    %v149 = vld [vmem:[#allocation2 + $0x2b8] sm:$0xff]
    %v150 = vld [vmem:[#allocation2 + $0x2c0] sm:$0xff]
    %v151 = vld [vmem:[#allocation2 + $0x2c8] sm:$0xff]
    %v152 = vld [vmem:[#allocation2 + $0x2d0] sm:$0xff]
    %v153 = vld [vmem:[#allocation2 + $0x2d8] sm:$0xff]
    %v154 = vld [vmem:[#allocation2 + $0x2e0] sm:$0xff]
    %v155 = vld [vmem:[#allocation2 + $0x2e8] sm:$0xff]
    %v156 = vld [vmem:[#allocation2 + $0x2f0] sm:$0xff]
    %v157 = vld [vmem:[#allocation2 + $0x2f8] sm:$0xff]
    %v158 = vld [vmem:[#allocation2 + $0x300] sm:$0xff]
    %v159 = vld [vmem:[#allocation2 + $0x308] sm:$0xff]
    %v160 = vld [vmem:[#allocation2 + $0x310] sm:$0xff]
    %v161 = vld [vmem:[#allocation2 + $0x318] sm:$0xff]
    %v162 = vld [vmem:[#allocation2 + $0x320] sm:$0xff]
    %v163 = vld [vmem:[#allocation2 + $0x328] sm:$0xff]
    %v164 = vld [vmem:[#allocation2 + $0x330] sm:$0xff]
    %v165 = vld [vmem:[#allocation2 + $0x338] sm:$0xff]
    %v166 = vld [vmem:[#allocation2 + $0x340] sm:$0xff]
    %v167 = vld [vmem:[#allocation2 + $0x348] sm:$0xff]
    %v168 = vld [vmem:[#allocation2 + $0x350] sm:$0xff]
    %v169 = vld [vmem:[#allocation2 + $0x358] sm:$0xff]
    %v170 = vld [vmem:[#allocation2 + $0x360] sm:$0xff]
    %v171 = vld [vmem:[#allocation2 + $0x368] sm:$0xff]
    %v172 = vld [vmem:[#allocation2 + $0x370] sm:$0xff]
    %v173 = vld [vmem:[#allocation2 + $0x378] sm:$0xff]
    %v174 = vld [vmem:[#allocation2 + $0x380] sm:$0xff]
    %v175 = vld [vmem:[#allocation2 + $0x388] sm:$0xff]
    %v176 = vld [vmem:[#allocation2 + $0x390] sm:$0xff]
    %v177 = vld [vmem:[#allocation2 + $0x398] sm:$0xff]
    %v178 = vld [vmem:[#allocation2 + $0x3a0] sm:$0xff]
    %v179 = vld [vmem:[#allocation2 + $0x3a8] sm:$0xff]
    %v180 = vld [vmem:[#allocation2 + $0x3b0] sm:$0xff]
    %v181 = vld [vmem:[#allocation2 + $0x3b8] sm:$0xff]
    %v182 = vld [vmem:[#allocation2 + $0x3c0] sm:$0xff]
    %v183 = vld [vmem:[#allocation2 + $0x3c8] sm:$0xff]
    %v184 = vld [vmem:[#allocation2 + $0x3d0] sm:$0xff]
    %v185 = vld [vmem:[#allocation2 + $0x3d8] sm:$0xff]
    %v186 = vld [vmem:[#allocation2 + $0x3e0] sm:$0xff]
    %v187 = vld [vmem:[#allocation2 + $0x3e8] sm:$0xff]
    %v188 = vld [vmem:[#allocation2 + $0x3f0] sm:$0xff]
    %v189 = vld [vmem:[#allocation2 + $0x3f8] sm:$0xff]
    %v190 = vld [vmem:[#allocation2 + $0x400] sm:$0xff]
    %v191 = vld [vmem:[#allocation2 + $0x408] sm:$0xff]
    %v192 = vld [vmem:[#allocation2 + $0x410] sm:$0xff]
    %v193 = vld [vmem:[#allocation2 + $0x418] sm:$0xff]
    %v194 = vld [vmem:[#allocation2 + $0x420] sm:$0xff]
    %v195 = vld [vmem:[#allocation2 + $0x428] sm:$0xff]
    %v196 = vld [vmem:[#allocation2 + $0x430] sm:$0xff]
    %v197 = vld [vmem:[#allocation2 + $0x438] sm:$0xff]
    %v198 = vld [vmem:[#allocation2 + $0x440] sm:$0xff]
    %v199 = vld [vmem:[#allocation2 + $0x448] sm:$0xff]
    %v200 = vld [vmem:[#allocation2 + $0x450] sm:$0xff]
    %v201 = vld [vmem:[#allocation2 + $0x458] sm:$0xff]
    %v202 = vld [vmem:[#allocation2 + $0x460] sm:$0xff]
    %v203 = vld [vmem:[#allocation2 + $0x468] sm:$0xff]
    %v204 = vld [vmem:[#allocation2 + $0x470] sm:$0xff]
    %v205 = vld [vmem:[#allocation2 + $0x478] sm:$0xff]
    %v206 = vld [vmem:[#allocation2 + $0x480] sm:$0xff]
    %v207 = vld [vmem:[#allocation2 + $0x488] sm:$0xff]
    %v208 = vld [vmem:[#allocation2 + $0x490] sm:$0xff]
    %v209 = vld [vmem:[#allocation2 + $0x498] sm:$0xff]
    %v210 = vld [vmem:[#allocation2 + $0x4a0] sm:$0xff]
    %v211 = vld [vmem:[#allocation2 + $0x4a8] sm:$0xff]
    %v212 = vld [vmem:[#allocation2 + $0x4b0] sm:$0xff]
    %v213 = vld [vmem:[#allocation2 + $0x4b8] sm:$0xff]
    %v214 = vld [vmem:[#allocation2 + $0x4c0] sm:$0xff]
    %v215 = vld [vmem:[#allocation2 + $0x4c8] sm:$0xff]
    %v216 = vld [vmem:[#allocation2 + $0x4d0] sm:$0xff]
    %v217 = vld [vmem:[#allocation2 + $0x4d8] sm:$0xff]
    %v218 = vld [vmem:[#allocation2 + $0x4e0] sm:$0xff]
    %v219 = vld [vmem:[#allocation2 + $0x4e8] sm:$0xff]
    %v220 = vld [vmem:[#allocation2 + $0x4f0] sm:$0xff]
    %v221 = vld [vmem:[#allocation2 + $0x4f8] sm:$0xff]
    %v222 = vld [vmem:[#allocation2 + $0x500] sm:$0xff]
    %v223 = vld [vmem:[#allocation2 + $0x508] sm:$0xff]
    %v224 = vld [vmem:[#allocation2 + $0x510] sm:$0xff]
    %v225 = vld [vmem:[#allocation2 + $0x518] sm:$0xff]
    %v226 = vld [vmem:[#allocation2 + $0x520] sm:$0xff]
    %v227 = vld [vmem:[#allocation2 + $0x528] sm:$0xff]
    %v228 = vld [vmem:[#allocation2 + $0x530] sm:$0xff]
    %v229 = vld [vmem:[#allocation2 + $0x538] sm:$0xff]
    %v230 = vld [vmem:[#allocation2 + $0x540] sm:$0xff]
    %v231 = vld [vmem:[#allocation2 + $0x548] sm:$0xff]
    %v232 = vld [vmem:[#allocation2 + $0x550] sm:$0xff]
    %v233 = vld [vmem:[#allocation2 + $0x558] sm:$0xff]
    %v234 = vld [vmem:[#allocation2 + $0x560] sm:$0xff]
    %v235 = vld [vmem:[#allocation2 + $0x568] sm:$0xff]
    %v236 = vld [vmem:[#allocation2 + $0x570] sm:$0xff]
    %v237 = vld [vmem:[#allocation2 + $0x578] sm:$0xff]
    %v238 = vld [vmem:[#allocation2 + $0x580] sm:$0xff]
    %v239 = vld [vmem:[#allocation2 + $0x588] sm:$0xff]
    %v240 = vld [vmem:[#allocation2 + $0x590] sm:$0xff]
    %v241 = vld [vmem:[#allocation2 + $0x598] sm:$0xff]
    %v242 = vld [vmem:[#allocation2 + $0x5a0] sm:$0xff]
    %v243 = vld [vmem:[#allocation2 + $0x5a8] sm:$0xff]
    %v244 = vld [vmem:[#allocation2 + $0x5b0] sm:$0xff]
    %v245 = vld [vmem:[#allocation2 + $0x5b8] sm:$0xff]
    %v246 = vld [vmem:[#allocation2 + $0x5c0] sm:$0xff]
    %v247 = vld [vmem:[#allocation2 + $0x5c8] sm:$0xff]
    %v248 = vld [vmem:[#allocation2 + $0x5d0] sm:$0xff]
    %v249 = vld [vmem:[#allocation2 + $0x5d8] sm:$0xff]
    %v250 = vld [vmem:[#allocation2 + $0x5e0] sm:$0xff]
    %v251 = vld [vmem:[#allocation2 + $0x5e8] sm:$0xff]
    %v252 = vld [vmem:[#allocation2 + $0x5f0] sm:$0xff]
    %v253 = vld [vmem:[#allocation2 + $0x5f8] sm:$0xff]
    %v254 = vunpack.c.l.s8.bf16 %v62
    %v255 = vunpack.c.l.s8.bf16 %v63
    %v256 = vunpack.c.l.s8.bf16 %v64
    %v257 = vunpack.c.h.s8.bf16 %v62
    %v258 = vunpack.c.h.s8.bf16 %v63
    %v259 = vunpack.c.h.s8.bf16 %v64
    %v260 = vunpack.c.l.s8.bf16 %v65
    %v261 = vunpack.c.l.s8.bf16 %v66
    %v262 = vunpack.c.l.s8.bf16 %v67
    %v263 = vunpack.c.h.s8.bf16 %v65
    %v264 = vunpack.c.h.s8.bf16 %v66
    %v265 = vunpack.c.h.s8.bf16 %v67
    %v266 = vunpack.c.l.s8.bf16 %v68
    %v267 = vunpack.c.l.s8.bf16 %v69
    %v268 = vunpack.c.l.s8.bf16 %v70
    %v269 = vunpack.c.h.s8.bf16 %v68
    %v270 = vunpack.c.h.s8.bf16 %v69
    %v271 = vunpack.c.h.s8.bf16 %v70
    %v272 = vunpack.c.l.s8.bf16 %v71
    %v273 = vunpack.c.l.s8.bf16 %v72
    %v274 = vunpack.c.l.s8.bf16 %v73
    %v275 = vunpack.c.h.s8.bf16 %v71
    %v276 = vunpack.c.h.s8.bf16 %v72
    %v277 = vunpack.c.h.s8.bf16 %v73
    %v278 = vunpack.c.l.s8.bf16 %v74
    %v279 = vunpack.c.l.s8.bf16 %v75
    %v280 = vunpack.c.l.s8.bf16 %v76
    %v281 = vunpack.c.h.s8.bf16 %v74
    %v282 = vunpack.c.h.s8.bf16 %v75
    %v283 = vunpack.c.h.s8.bf16 %v76
    %v284 = vunpack.c.l.s8.bf16 %v77
    %v285 = vunpack.c.l.s8.bf16 %v78
    %v286 = vunpack.c.l.s8.bf16 %v79
    %v287 = vunpack.c.h.s8.bf16 %v77
    %v288 = vunpack.c.h.s8.bf16 %v78
    %v289 = vunpack.c.h.s8.bf16 %v79
    %v290 = vunpack.c.l.s8.bf16 %v80
    %v291 = vunpack.c.l.s8.bf16 %v81
    %v292 = vunpack.c.l.s8.bf16 %v82
    %v293 = vunpack.c.h.s8.bf16 %v80
    %v294 = vunpack.c.h.s8.bf16 %v81
    %v295 = vunpack.c.h.s8.bf16 %v82
    %v296 = vunpack.c.l.s8.bf16 %v83
    %v297 = vunpack.c.l.s8.bf16 %v84
    %v298 = vunpack.c.l.s8.bf16 %v85
    %v299 = vunpack.c.h.s8.bf16 %v83
    %v300 = vunpack.c.h.s8.bf16 %v84
    %v301 = vunpack.c.h.s8.bf16 %v85
    %v302 = vunpack.c.l.s8.bf16 %v86
    %v303 = vunpack.c.l.s8.bf16 %v87
    %v304 = vunpack.c.l.s8.bf16 %v88
    %v305 = vunpack.c.h.s8.bf16 %v86
    %v306 = vunpack.c.h.s8.bf16 %v87
    %v307 = vunpack.c.h.s8.bf16 %v88
    %v308 = vunpack.c.l.s8.bf16 %v89
    %v309 = vunpack.c.l.s8.bf16 %v90
    %v310 = vunpack.c.l.s8.bf16 %v91
    %v311 = vunpack.c.h.s8.bf16 %v89
    %v312 = vunpack.c.h.s8.bf16 %v90
    %v313 = vunpack.c.h.s8.bf16 %v91
    %v314 = vunpack.c.l.s8.bf16 %v92
    %v315 = vunpack.c.l.s8.bf16 %v93
    %v316 = vunpack.c.l.s8.bf16 %v94
    %v317 = vunpack.c.h.s8.bf16 %v92
    %v318 = vunpack.c.h.s8.bf16 %v93
    %v319 = vunpack.c.h.s8.bf16 %v94
    %v320 = vunpack.c.l.s8.bf16 %v95
    %v321 = vunpack.c.l.s8.bf16 %v96
    %v322 = vunpack.c.l.s8.bf16 %v97
    %v323 = vunpack.c.h.s8.bf16 %v95
    %v324 = vunpack.c.h.s8.bf16 %v96
    %v325 = vunpack.c.h.s8.bf16 %v97
    %v326 = vunpack.c.l.s8.bf16 %v98
    %v327 = vunpack.c.l.s8.bf16 %v99
    %v328 = vunpack.c.l.s8.bf16 %v100
    %v329 = vunpack.c.h.s8.bf16 %v98
    %v330 = vunpack.c.h.s8.bf16 %v99
    %v331 = vunpack.c.h.s8.bf16 %v100
    %v332 = vunpack.c.l.s8.bf16 %v101
    %v333 = vunpack.c.l.s8.bf16 %v102
    %v334 = vunpack.c.l.s8.bf16 %v103
    %v335 = vunpack.c.h.s8.bf16 %v101
    %v336 = vunpack.c.h.s8.bf16 %v102
    %v337 = vunpack.c.h.s8.bf16 %v103
    %v338 = vunpack.c.l.s8.bf16 %v104
    %v339 = vunpack.c.l.s8.bf16 %v105
    %v340 = vunpack.c.l.s8.bf16 %v106
    %v341 = vunpack.c.h.s8.bf16 %v104
    %v342 = vunpack.c.h.s8.bf16 %v105
    %v343 = vunpack.c.h.s8.bf16 %v106
    %v344 = vunpack.c.l.s8.bf16 %v107
    %v345 = vunpack.c.l.s8.bf16 %v108
    %v346 = vunpack.c.l.s8.bf16 %v109
    %v347 = vunpack.c.h.s8.bf16 %v107
    %v348 = vunpack.c.h.s8.bf16 %v108
    %v349 = vunpack.c.h.s8.bf16 %v109
    %v350 = vunpack.c.l.s8.bf16 %v110
    %v351 = vunpack.c.l.s8.bf16 %v111
    %v352 = vunpack.c.l.s8.bf16 %v112
    %v353 = vunpack.c.h.s8.bf16 %v110
    %v354 = vunpack.c.h.s8.bf16 %v111
    %v355 = vunpack.c.h.s8.bf16 %v112
    %v356 = vunpack.c.l.s8.bf16 %v113
    %v357 = vunpack.c.l.s8.bf16 %v114
    %v358 = vunpack.c.l.s8.bf16 %v115
    %v359 = vunpack.c.h.s8.bf16 %v113
    %v360 = vunpack.c.h.s8.bf16 %v114
    %v361 = vunpack.c.h.s8.bf16 %v115
    %v362 = vunpack.c.l.s8.bf16 %v116
    %v363 = vunpack.c.l.s8.bf16 %v117
    %v364 = vunpack.c.l.s8.bf16 %v118
    %v365 = vunpack.c.h.s8.bf16 %v116
    %v366 = vunpack.c.h.s8.bf16 %v117
    %v367 = vunpack.c.h.s8.bf16 %v118
    %v368 = vunpack.c.l.s8.bf16 %v119
    %v369 = vunpack.c.l.s8.bf16 %v120
    %v370 = vunpack.c.l.s8.bf16 %v121
    %v371 = vunpack.c.h.s8.bf16 %v119
    %v372 = vunpack.c.h.s8.bf16 %v120
    %v373 = vunpack.c.h.s8.bf16 %v121
    %v374 = vunpack.c.l.s8.bf16 %v122
    %v375 = vunpack.c.l.s8.bf16 %v123
    %v376 = vunpack.c.l.s8.bf16 %v124
    %v377 = vunpack.c.h.s8.bf16 %v122
    %v378 = vunpack.c.h.s8.bf16 %v123
    %v379 = vunpack.c.h.s8.bf16 %v124
    %v380 = vunpack.c.l.s8.bf16 %v125
    %v381 = vunpack.c.l.s8.bf16 %v126
    %v382 = vunpack.c.l.s8.bf16 %v127
    %v383 = vunpack.c.h.s8.bf16 %v125
    %v384 = vunpack.c.h.s8.bf16 %v126
    %v385 = vunpack.c.h.s8.bf16 %v127
    %v386 = vunpack.c.l.s8.bf16 %v128
    %v387 = vunpack.c.l.s8.bf16 %v129
    %v388 = vunpack.c.l.s8.bf16 %v130
    %v389 = vunpack.c.h.s8.bf16 %v128
    %v390 = vunpack.c.h.s8.bf16 %v129
    %v391 = vunpack.c.h.s8.bf16 %v130
    %v392 = vunpack.c.l.s8.bf16 %v131
    %v393 = vunpack.c.l.s8.bf16 %v132
    %v394 = vunpack.c.l.s8.bf16 %v133
    %v395 = vunpack.c.h.s8.bf16 %v131
    %v396 = vunpack.c.h.s8.bf16 %v132
    %v397 = vunpack.c.h.s8.bf16 %v133
    %v398 = vunpack.c.l.s8.bf16 %v134
    %v399 = vunpack.c.l.s8.bf16 %v135
    %v400 = vunpack.c.l.s8.bf16 %v136
    %v401 = vunpack.c.h.s8.bf16 %v134
    %v402 = vunpack.c.h.s8.bf16 %v135
    %v403 = vunpack.c.h.s8.bf16 %v136
    %v404 = vunpack.c.l.s8.bf16 %v137
    %v405 = vunpack.c.l.s8.bf16 %v138
    %v406 = vunpack.c.l.s8.bf16 %v139
    %v407 = vunpack.c.h.s8.bf16 %v137
    %v408 = vunpack.c.h.s8.bf16 %v138
    %v409 = vunpack.c.h.s8.bf16 %v139
    %v410 = vunpack.c.l.s8.bf16 %v140
    %v411 = vunpack.c.l.s8.bf16 %v141
    %v412 = vunpack.c.l.s8.bf16 %v142
    %v413 = vunpack.c.h.s8.bf16 %v140
    %v414 = vunpack.c.h.s8.bf16 %v141
    %v415 = vunpack.c.h.s8.bf16 %v142
    %v416 = vunpack.c.l.s8.bf16 %v143
    %v417 = vunpack.c.l.s8.bf16 %v144
    %v418 = vunpack.c.l.s8.bf16 %v145
    %v419 = vunpack.c.h.s8.bf16 %v143
    %v420 = vunpack.c.h.s8.bf16 %v144
    %v421 = vunpack.c.h.s8.bf16 %v145
    %v422 = vunpack.c.l.s8.bf16 %v146
    %v423 = vunpack.c.l.s8.bf16 %v147
    %v424 = vunpack.c.l.s8.bf16 %v148
    %v425 = vunpack.c.h.s8.bf16 %v146
    %v426 = vunpack.c.h.s8.bf16 %v147
    %v427 = vunpack.c.h.s8.bf16 %v148
    %v428 = vunpack.c.l.s8.bf16 %v149
    %v429 = vunpack.c.l.s8.bf16 %v150
    %v430 = vunpack.c.l.s8.bf16 %v151
    %v431 = vunpack.c.h.s8.bf16 %v149
    %v432 = vunpack.c.h.s8.bf16 %v150
    %v433 = vunpack.c.h.s8.bf16 %v151
    %v434 = vunpack.c.l.s8.bf16 %v152
    %v435 = vunpack.c.l.s8.bf16 %v153
    %v436 = vunpack.c.l.s8.bf16 %v154
    %v437 = vunpack.c.h.s8.bf16 %v152
    %v438 = vunpack.c.h.s8.bf16 %v153
    %v439 = vunpack.c.h.s8.bf16 %v154
    %v440 = vunpack.c.l.s8.bf16 %v155
    %v441 = vunpack.c.l.s8.bf16 %v156
    %v442 = vunpack.c.l.s8.bf16 %v157
    %v443 = vunpack.c.h.s8.bf16 %v155
    %v444 = vunpack.c.h.s8.bf16 %v156
    %v445 = vunpack.c.h.s8.bf16 %v157
    %v446 = vunpack.c.l.s8.bf16 %v158
    %v447 = vunpack.c.l.s8.bf16 %v159
    %v448 = vunpack.c.l.s8.bf16 %v160
    %v449 = vunpack.c.h.s8.bf16 %v158
    %v450 = vunpack.c.h.s8.bf16 %v159
    %v451 = vunpack.c.h.s8.bf16 %v160
    %v452 = vunpack.c.l.s8.bf16 %v161
    %v453 = vunpack.c.l.s8.bf16 %v162
    %v454 = vunpack.c.l.s8.bf16 %v163
    %v455 = vunpack.c.h.s8.bf16 %v161
    %v456 = vunpack.c.h.s8.bf16 %v162
    %v457 = vunpack.c.h.s8.bf16 %v163
    %v458 = vunpack.c.l.s8.bf16 %v164
    %v459 = vunpack.c.l.s8.bf16 %v165
    %v460 = vunpack.c.l.s8.bf16 %v166
    %v461 = vunpack.c.h.s8.bf16 %v164
    %v462 = vunpack.c.h.s8.bf16 %v165
    %v463 = vunpack.c.h.s8.bf16 %v166
    %v464 = vunpack.c.l.s8.bf16 %v167
    %v465 = vunpack.c.l.s8.bf16 %v168
    %v466 = vunpack.c.l.s8.bf16 %v169
    %v467 = vunpack.c.h.s8.bf16 %v167
    %v468 = vunpack.c.h.s8.bf16 %v168
    %v469 = vunpack.c.h.s8.bf16 %v169
    %v470 = vunpack.c.l.s8.bf16 %v170
    %v471 = vunpack.c.l.s8.bf16 %v171
    %v472 = vunpack.c.l.s8.bf16 %v172
    %v473 = vunpack.c.h.s8.bf16 %v170
    %v474 = vunpack.c.h.s8.bf16 %v171
    %v475 = vunpack.c.h.s8.bf16 %v172
    %v476 = vunpack.c.l.s8.bf16 %v173
    %v477 = vunpack.c.l.s8.bf16 %v174
    %v478 = vunpack.c.l.s8.bf16 %v175
    %v479 = vunpack.c.h.s8.bf16 %v173
    %v480 = vunpack.c.h.s8.bf16 %v174
    %v481 = vunpack.c.h.s8.bf16 %v175
    %v482 = vunpack.c.l.s8.bf16 %v176
    %v483 = vunpack.c.l.s8.bf16 %v177
    %v484 = vunpack.c.l.s8.bf16 %v178
    %v485 = vunpack.c.h.s8.bf16 %v176
    %v486 = vunpack.c.h.s8.bf16 %v177
    %v487 = vunpack.c.h.s8.bf16 %v178
    %v488 = vunpack.c.l.s8.bf16 %v179
    %v489 = vunpack.c.l.s8.bf16 %v180
    %v490 = vunpack.c.l.s8.bf16 %v181
    %v491 = vunpack.c.h.s8.bf16 %v179
    %v492 = vunpack.c.h.s8.bf16 %v180
    %v493 = vunpack.c.h.s8.bf16 %v181
    %v494 = vunpack.c.l.s8.bf16 %v182
    %v495 = vunpack.c.l.s8.bf16 %v183
    %v496 = vunpack.c.l.s8.bf16 %v184
    %v497 = vunpack.c.h.s8.bf16 %v182
    %v498 = vunpack.c.h.s8.bf16 %v183
    %v499 = vunpack.c.h.s8.bf16 %v184
    %v500 = vunpack.c.l.s8.bf16 %v185
    %v501 = vunpack.c.l.s8.bf16 %v186
    %v502 = vunpack.c.l.s8.bf16 %v187
    %v503 = vunpack.c.h.s8.bf16 %v185
    %v504 = vunpack.c.h.s8.bf16 %v186
    %v505 = vunpack.c.h.s8.bf16 %v187
    %v506 = vunpack.c.l.s8.bf16 %v188
    %v507 = vunpack.c.l.s8.bf16 %v189
    %v508 = vunpack.c.l.s8.bf16 %v190
    %v509 = vunpack.c.h.s8.bf16 %v188
    %v510 = vunpack.c.h.s8.bf16 %v189
    %v511 = vunpack.c.h.s8.bf16 %v190
    %v512 = vunpack.c.l.s8.bf16 %v191
    %v513 = vunpack.c.l.s8.bf16 %v192
    %v514 = vunpack.c.l.s8.bf16 %v193
    %v515 = vunpack.c.h.s8.bf16 %v191
    %v516 = vunpack.c.h.s8.bf16 %v192
    %v517 = vunpack.c.h.s8.bf16 %v193
    %v518 = vunpack.c.l.s8.bf16 %v194
    %v519 = vunpack.c.l.s8.bf16 %v195
    %v520 = vunpack.c.l.s8.bf16 %v196
    %v521 = vunpack.c.h.s8.bf16 %v194
    %v522 = vunpack.c.h.s8.bf16 %v195
    %v523 = vunpack.c.h.s8.bf16 %v196
    %v524 = vunpack.c.l.s8.bf16 %v197
    %v525 = vunpack.c.l.s8.bf16 %v198
    %v526 = vunpack.c.l.s8.bf16 %v199
    %v527 = vunpack.c.h.s8.bf16 %v197
    %v528 = vunpack.c.h.s8.bf16 %v198
    %v529 = vunpack.c.h.s8.bf16 %v199
    %v530 = vunpack.c.l.s8.bf16 %v200
    %v531 = vunpack.c.l.s8.bf16 %v201
    %v532 = vunpack.c.l.s8.bf16 %v202
    %v533 = vunpack.c.h.s8.bf16 %v200
    %v534 = vunpack.c.h.s8.bf16 %v201
    %v535 = vunpack.c.h.s8.bf16 %v202
    %v536 = vunpack.c.l.s8.bf16 %v203
    %v537 = vunpack.c.l.s8.bf16 %v204
    %v538 = vunpack.c.l.s8.bf16 %v205
    %v539 = vunpack.c.h.s8.bf16 %v203
    %v540 = vunpack.c.h.s8.bf16 %v204
    %v541 = vunpack.c.h.s8.bf16 %v205
    %v542 = vunpack.c.l.s8.bf16 %v206
    %v543 = vunpack.c.l.s8.bf16 %v207
    %v544 = vunpack.c.l.s8.bf16 %v208
    %v545 = vunpack.c.h.s8.bf16 %v206
    %v546 = vunpack.c.h.s8.bf16 %v207
    %v547 = vunpack.c.h.s8.bf16 %v208
    %v548 = vunpack.c.l.s8.bf16 %v209
    %v549 = vunpack.c.l.s8.bf16 %v210
    %v550 = vunpack.c.l.s8.bf16 %v211
    %v551 = vunpack.c.h.s8.bf16 %v209
    %v552 = vunpack.c.h.s8.bf16 %v210
    %v553 = vunpack.c.h.s8.bf16 %v211
    %v554 = vunpack.c.l.s8.bf16 %v212
    %v555 = vunpack.c.l.s8.bf16 %v213
    %v556 = vunpack.c.l.s8.bf16 %v214
    %v557 = vunpack.c.h.s8.bf16 %v212
    %v558 = vunpack.c.h.s8.bf16 %v213
    %v559 = vunpack.c.h.s8.bf16 %v214
    %v560 = vunpack.c.l.s8.bf16 %v215
    %v561 = vunpack.c.l.s8.bf16 %v216
    %v562 = vunpack.c.l.s8.bf16 %v217
    %v563 = vunpack.c.h.s8.bf16 %v215
    %v564 = vunpack.c.h.s8.bf16 %v216
    %v565 = vunpack.c.h.s8.bf16 %v217
    %v566 = vunpack.c.l.s8.bf16 %v218
    %v567 = vunpack.c.l.s8.bf16 %v219
    %v568 = vunpack.c.l.s8.bf16 %v220
    %v569 = vunpack.c.h.s8.bf16 %v218
    %v570 = vunpack.c.h.s8.bf16 %v219
    %v571 = vunpack.c.h.s8.bf16 %v220
    %v572 = vunpack.c.l.s8.bf16 %v221
    %v573 = vunpack.c.l.s8.bf16 %v222
    %v574 = vunpack.c.l.s8.bf16 %v223
    %v575 = vunpack.c.h.s8.bf16 %v221
    %v576 = vunpack.c.h.s8.bf16 %v222
    %v577 = vunpack.c.h.s8.bf16 %v223
    %v578 = vunpack.c.l.s8.bf16 %v224
    %v579 = vunpack.c.l.s8.bf16 %v225
    %v580 = vunpack.c.l.s8.bf16 %v226
    %v581 = vunpack.c.h.s8.bf16 %v224
    %v582 = vunpack.c.h.s8.bf16 %v225
    %v583 = vunpack.c.h.s8.bf16 %v226
    %v584 = vunpack.c.l.s8.bf16 %v227
    %v585 = vunpack.c.l.s8.bf16 %v228
    %v586 = vunpack.c.l.s8.bf16 %v229
    %v587 = vunpack.c.h.s8.bf16 %v227
    %v588 = vunpack.c.h.s8.bf16 %v228
    %v589 = vunpack.c.h.s8.bf16 %v229
    %v590 = vunpack.c.l.s8.bf16 %v230
    %v591 = vunpack.c.l.s8.bf16 %v231
    %v592 = vunpack.c.l.s8.bf16 %v232
    %v593 = vunpack.c.h.s8.bf16 %v230
    %v594 = vunpack.c.h.s8.bf16 %v231
    %v595 = vunpack.c.h.s8.bf16 %v232
    %v596 = vunpack.c.l.s8.bf16 %v233
    %v597 = vunpack.c.l.s8.bf16 %v234
    %v598 = vunpack.c.l.s8.bf16 %v235
    %v599 = vunpack.c.h.s8.bf16 %v233
    %v600 = vunpack.c.h.s8.bf16 %v234
    %v601 = vunpack.c.h.s8.bf16 %v235
    %v602 = vunpack.c.l.s8.bf16 %v236
    %v603 = vunpack.c.l.s8.bf16 %v237
    %v604 = vunpack.c.l.s8.bf16 %v238
    %v605 = vunpack.c.h.s8.bf16 %v236
    %v606 = vunpack.c.h.s8.bf16 %v237
    %v607 = vunpack.c.h.s8.bf16 %v238
    %v608 = vunpack.c.l.s8.bf16 %v239
    %v609 = vunpack.c.l.s8.bf16 %v240
    %v610 = vunpack.c.l.s8.bf16 %v241
    %v611 = vunpack.c.h.s8.bf16 %v239
    %v612 = vunpack.c.h.s8.bf16 %v240
    %v613 = vunpack.c.h.s8.bf16 %v241
    %v614 = vunpack.c.l.s8.bf16 %v242
    %v615 = vunpack.c.l.s8.bf16 %v243
    %v616 = vunpack.c.l.s8.bf16 %v244
    %v617 = vunpack.c.h.s8.bf16 %v242
    %v618 = vunpack.c.h.s8.bf16 %v243
    %v619 = vunpack.c.h.s8.bf16 %v244
    %v620 = vunpack.c.l.s8.bf16 %v245
    %v621 = vunpack.c.l.s8.bf16 %v246
    %v622 = vunpack.c.l.s8.bf16 %v247
    %v623 = vunpack.c.h.s8.bf16 %v245
    %v624 = vunpack.c.h.s8.bf16 %v246
    %v625 = vunpack.c.h.s8.bf16 %v247
    %v626 = vunpack.c.l.s8.bf16 %v248
    %v627 = vunpack.c.l.s8.bf16 %v249
    %v628 = vunpack.c.l.s8.bf16 %v250
    %v629 = vunpack.c.h.s8.bf16 %v248
    %v630 = vunpack.c.h.s8.bf16 %v249
    %v631 = vunpack.c.h.s8.bf16 %v250
    %v632 = vunpack.c.l.s8.bf16 %v251
    %v633 = vunpack.c.l.s8.bf16 %v252
    %v634 = vunpack.c.l.s8.bf16 %v253
    %v635 = vunpack.c.h.s8.bf16 %v251
    %v636 = vunpack.c.h.s8.bf16 %v252
    %v637 = vunpack.c.h.s8.bf16 %v253
    %638 = vmatprep.subr.bf16.mxu0 %v276
    %639 = vmatpush1.bf16.msra.mxu0 %v275
    %640 = vmatprep.subr.bf16.mxu0 %v273
    %641 = vmatpush1.bf16.msra.mxu0 %v272
    %642 = vmatprep.subr.bf16.mxu0 %v270
    %643 = vmatpush1.bf16.msra.mxu0 %v269
    %644 = vmatprep.subr.bf16.mxu0 %v267
    %645 = vmatpush1.bf16.msra.mxu0 %v266
    %646 = vmatprep.subr.bf16.mxu0 %v264
    %647 = vmatpush1.bf16.msra.mxu0 %v263
    %648 = vmatprep.subr.bf16.mxu0 %v261
    %649 = vmatpush1.bf16.msra.mxu0 %v260
    %650 = vmatprep.subr.bf16.mxu0 %v258
    %651 = vmatpush1.bf16.msra.mxu0 %v257
    %652 = vmatprep.subr.bf16.mxu0 %v255
    %653 = vmatpush1.bf16.msra.mxu0 %v254
    %654 = vmatprep.subr.bf16.mxu0 %v300
    %655 = vmatpush2.bf16.msra.mxu0 %v299
    %656 = vmatprep.subr.bf16.mxu0 %v297
    %657 = vmatpush2.bf16.msra.mxu0 %v296
    %658 = vmatprep.subr.bf16.mxu0 %v294
    %659 = vmatpush2.bf16.msra.mxu0 %v293
    %660 = vmatprep.subr.bf16.mxu0 %v291
    %661 = vmatpush2.bf16.msra.mxu0 %v290
    %662 = vmatprep.subr.bf16.mxu0 %v288
    %663 = vmatpush2.bf16.msra.mxu0 %v287
    %664 = vmatprep.subr.bf16.mxu0 %v285
    %665 = vmatpush2.bf16.msra.mxu0 %v284
    %666 = vmatprep.subr.bf16.mxu0 %v282
    %667 = vmatpush2.bf16.msra.mxu0 %v281
    %668 = vmatprep.subr.bf16.mxu0 %v279
    %669 = vmatpush2.bf16.msra.mxu0 %v278
    %670 = vmatprep.mubr.bf16.mxu0 %v47
    %671 = vmatmul.mubr.bf16.gmra.mxu0 %v46
    %v672 = vpop.f32.mrf.mxu0
    %v673 = vadd.f32 0.0, %v672
    %v674 = vpop.f32.mrf.mxu0
    %v675 = vadd.f32 0.0, %v674
    %v676 = vpop.f32.mrf.mxu0
    %v677 = vpop.f32.mrf.mxu0
    %678 = vdwg.mxu0
    %679 = vmatprep.subr.bf16.mxu0 %v324
    %680 = vmatpush1.bf16.msra.mxu0 %v323
    %681 = vmatprep.subr.bf16.mxu0 %v321
    %682 = vmatpush1.bf16.msra.mxu0 %v320
    %683 = vmatprep.subr.bf16.mxu0 %v318
    %684 = vmatpush1.bf16.msra.mxu0 %v317
    %685 = vmatprep.subr.bf16.mxu0 %v315
    %686 = vmatpush1.bf16.msra.mxu0 %v314
    %687 = vmatprep.subr.bf16.mxu0 %v312
    %688 = vmatpush1.bf16.msra.mxu0 %v311
    %689 = vmatprep.subr.bf16.mxu0 %v309
    %690 = vmatpush1.bf16.msra.mxu0 %v308
    %691 = vmatprep.subr.bf16.mxu0 %v306
    %692 = vmatpush1.bf16.msra.mxu0 %v305
    %693 = vmatprep.subr.bf16.mxu0 %v303
    %694 = vmatpush1.bf16.msra.mxu0 %v302
    %695 = vmatprep.subr.bf16.mxu0 %v348
    %696 = vmatpush2.bf16.msra.mxu0 %v347
    %697 = vmatprep.subr.bf16.mxu0 %v345
    %698 = vmatpush2.bf16.msra.mxu0 %v344
    %699 = vmatprep.subr.bf16.mxu0 %v342
    %700 = vmatpush2.bf16.msra.mxu0 %v341
    %701 = vmatprep.subr.bf16.mxu0 %v339
    %702 = vmatpush2.bf16.msra.mxu0 %v338
    %703 = vmatprep.subr.bf16.mxu0 %v336
    %704 = vmatpush2.bf16.msra.mxu0 %v335
    %705 = vmatprep.subr.bf16.mxu0 %v333
    %706 = vmatpush2.bf16.msra.mxu0 %v332
    %707 = vmatprep.subr.bf16.mxu0 %v330
    %708 = vmatpush2.bf16.msra.mxu0 %v329
    %709 = vmatprep.subr.bf16.mxu0 %v327
    %710 = vmatpush2.bf16.msra.mxu0 %v326
    %711 = vmatprep.mubr.bf16.mxu0 %v49
    %712 = vmatmul.mubr.bf16.gmra.mxu0 %v48
    %v713 = vpop.f32.mrf.mxu0
    %v714 = vadd.f32 %v673, %v713
    %v715 = vpop.f32.mrf.mxu0
    %v716 = vadd.f32 %v675, %v715
    %v717 = vpop.f32.mrf.mxu0
    %v718 = vpop.f32.mrf.mxu0
    %719 = vdwg.mxu0
    %720 = vmatprep.subr.bf16.mxu0 %v372
    %721 = vmatpush1.bf16.msra.mxu0 %v371
    %722 = vmatprep.subr.bf16.mxu0 %v369
    %723 = vmatpush1.bf16.msra.mxu0 %v368
    %724 = vmatprep.subr.bf16.mxu0 %v366
    %725 = vmatpush1.bf16.msra.mxu0 %v365
    %726 = vmatprep.subr.bf16.mxu0 %v363
    %727 = vmatpush1.bf16.msra.mxu0 %v362
    %728 = vmatprep.subr.bf16.mxu0 %v360
    %729 = vmatpush1.bf16.msra.mxu0 %v359
    %730 = vmatprep.subr.bf16.mxu0 %v357
    %731 = vmatpush1.bf16.msra.mxu0 %v356
    %732 = vmatprep.subr.bf16.mxu0 %v354
    %733 = vmatpush1.bf16.msra.mxu0 %v353
    %734 = vmatprep.subr.bf16.mxu0 %v351
    %735 = vmatpush1.bf16.msra.mxu0 %v350
    %736 = vmatprep.subr.bf16.mxu0 %v396
    %737 = vmatpush2.bf16.msra.mxu0 %v395
    %738 = vmatprep.subr.bf16.mxu0 %v393
    %739 = vmatpush2.bf16.msra.mxu0 %v392
    %740 = vmatprep.subr.bf16.mxu0 %v390
    %741 = vmatpush2.bf16.msra.mxu0 %v389
    %742 = vmatprep.subr.bf16.mxu0 %v387
    %743 = vmatpush2.bf16.msra.mxu0 %v386
    %744 = vmatprep.subr.bf16.mxu0 %v384
    %745 = vmatpush2.bf16.msra.mxu0 %v383
    %746 = vmatprep.subr.bf16.mxu0 %v381
    %747 = vmatpush2.bf16.msra.mxu0 %v380
    %748 = vmatprep.subr.bf16.mxu0 %v378
    %749 = vmatpush2.bf16.msra.mxu0 %v377
    %750 = vmatprep.subr.bf16.mxu0 %v375
    %751 = vmatpush2.bf16.msra.mxu0 %v374
    %752 = vmatprep.mubr.bf16.mxu0 %v51
    %753 = vmatmul.mubr.bf16.gmra.mxu0 %v50
    %v754 = vpop.f32.mrf.mxu0
    %v755 = vadd.f32 %v714, %v754
    %v756 = vpop.f32.mrf.mxu0
    %v757 = vadd.f32 %v716, %v756
    %v758 = vpop.f32.mrf.mxu0
    %v759 = vpop.f32.mrf.mxu0
    %760 = vdwg.mxu0
    %761 = vmatprep.subr.bf16.mxu0 %v420
    %762 = vmatpush1.bf16.msra.mxu0 %v419
    %763 = vmatprep.subr.bf16.mxu0 %v417
    %764 = vmatpush1.bf16.msra.mxu0 %v416
    %765 = vmatprep.subr.bf16.mxu0 %v414
    %766 = vmatpush1.bf16.msra.mxu0 %v413
    %767 = vmatprep.subr.bf16.mxu0 %v411
    %768 = vmatpush1.bf16.msra.mxu0 %v410
    %769 = vmatprep.subr.bf16.mxu0 %v408
    %770 = vmatpush1.bf16.msra.mxu0 %v407
    %771 = vmatprep.subr.bf16.mxu0 %v405
    %772 = vmatpush1.bf16.msra.mxu0 %v404
    %773 = vmatprep.subr.bf16.mxu0 %v402
    %774 = vmatpush1.bf16.msra.mxu0 %v401
    %775 = vmatprep.subr.bf16.mxu0 %v399
    %776 = vmatpush1.bf16.msra.mxu0 %v398
    %777 = vmatprep.subr.bf16.mxu0 %v444
    %778 = vmatpush2.bf16.msra.mxu0 %v443
    %779 = vmatprep.subr.bf16.mxu0 %v441
    %780 = vmatpush2.bf16.msra.mxu0 %v440
    %781 = vmatprep.subr.bf16.mxu0 %v438
    %782 = vmatpush2.bf16.msra.mxu0 %v437
    %783 = vmatprep.subr.bf16.mxu0 %v435
    %784 = vmatpush2.bf16.msra.mxu0 %v434
    %785 = vmatprep.subr.bf16.mxu0 %v432
    %786 = vmatpush2.bf16.msra.mxu0 %v431
    %787 = vmatprep.subr.bf16.mxu0 %v429
    %788 = vmatpush2.bf16.msra.mxu0 %v428
    %789 = vmatprep.subr.bf16.mxu0 %v426
    %790 = vmatpush2.bf16.msra.mxu0 %v425
    %791 = vmatprep.subr.bf16.mxu0 %v423
    %792 = vmatpush2.bf16.msra.mxu0 %v422
    %793 = vmatprep.mubr.bf16.mxu0 %v53
    %794 = vmatmul.mubr.bf16.gmra.mxu0 %v52
    %v795 = vpop.f32.mrf.mxu0
    %v796 = vadd.f32 %v755, %v795
    %v797 = vpop.f32.mrf.mxu0
    %v798 = vadd.f32 %v757, %v797
    %v799 = vpop.f32.mrf.mxu0
    %v800 = vpop.f32.mrf.mxu0
    %801 = vdwg.mxu0
    %802 = vmatprep.subr.bf16.mxu0 %v468
    %803 = vmatpush1.bf16.msra.mxu0 %v467
    %804 = vmatprep.subr.bf16.mxu0 %v465
    %805 = vmatpush1.bf16.msra.mxu0 %v464
    %806 = vmatprep.subr.bf16.mxu0 %v462
    %807 = vmatpush1.bf16.msra.mxu0 %v461
    %808 = vmatprep.subr.bf16.mxu0 %v459
    %809 = vmatpush1.bf16.msra.mxu0 %v458
    %810 = vmatprep.subr.bf16.mxu0 %v456
    %811 = vmatpush1.bf16.msra.mxu0 %v455
    %812 = vmatprep.subr.bf16.mxu0 %v453
    %813 = vmatpush1.bf16.msra.mxu0 %v452
    %814 = vmatprep.subr.bf16.mxu0 %v450
    %815 = vmatpush1.bf16.msra.mxu0 %v449
    %816 = vmatprep.subr.bf16.mxu0 %v447
    %817 = vmatpush1.bf16.msra.mxu0 %v446
    %818 = vmatprep.subr.bf16.mxu0 %v492
    %819 = vmatpush2.bf16.msra.mxu0 %v491
    %820 = vmatprep.subr.bf16.mxu0 %v489
    %821 = vmatpush2.bf16.msra.mxu0 %v488
    %822 = vmatprep.subr.bf16.mxu0 %v486
    %823 = vmatpush2.bf16.msra.mxu0 %v485
    %824 = vmatprep.subr.bf16.mxu0 %v483
    %825 = vmatpush2.bf16.msra.mxu0 %v482
    %826 = vmatprep.subr.bf16.mxu0 %v480
    %827 = vmatpush2.bf16.msra.mxu0 %v479
    %828 = vmatprep.subr.bf16.mxu0 %v477
    %829 = vmatpush2.bf16.msra.mxu0 %v476
    %830 = vmatprep.subr.bf16.mxu0 %v474
    %831 = vmatpush2.bf16.msra.mxu0 %v473
    %832 = vmatprep.subr.bf16.mxu0 %v471
    %833 = vmatpush2.bf16.msra.mxu0 %v470
    %834 = vmatprep.mubr.bf16.mxu0 %v55
    %835 = vmatmul.mubr.bf16.gmra.mxu0 %v54
    %v836 = vpop.f32.mrf.mxu0
    %v837 = vadd.f32 %v796, %v836
    %v838 = vpop.f32.mrf.mxu0
    %v839 = vadd.f32 %v798, %v838
    %v840 = vpop.f32.mrf.mxu0
    %v841 = vpop.f32.mrf.mxu0
    %842 = vdwg.mxu0
    %843 = vmatprep.subr.bf16.mxu0 %v516
    %844 = vmatpush1.bf16.msra.mxu0 %v515
    %845 = vmatprep.subr.bf16.mxu0 %v513
    %846 = vmatpush1.bf16.msra.mxu0 %v512
    %847 = vmatprep.subr.bf16.mxu0 %v510
    %848 = vmatpush1.bf16.msra.mxu0 %v509
    %849 = vmatprep.subr.bf16.mxu0 %v507
    %850 = vmatpush1.bf16.msra.mxu0 %v506
    %851 = vmatprep.subr.bf16.mxu0 %v504
    %852 = vmatpush1.bf16.msra.mxu0 %v503
    %853 = vmatprep.subr.bf16.mxu0 %v501
    %854 = vmatpush1.bf16.msra.mxu0 %v500
    %855 = vmatprep.subr.bf16.mxu0 %v498
    %856 = vmatpush1.bf16.msra.mxu0 %v497
    %857 = vmatprep.subr.bf16.mxu0 %v495
    %858 = vmatpush1.bf16.msra.mxu0 %v494
    %859 = vmatprep.subr.bf16.mxu0 %v540
    %860 = vmatpush2.bf16.msra.mxu0 %v539
    %861 = vmatprep.subr.bf16.mxu0 %v537
    %862 = vmatpush2.bf16.msra.mxu0 %v536
    %863 = vmatprep.subr.bf16.mxu0 %v534
    %864 = vmatpush2.bf16.msra.mxu0 %v533
    %865 = vmatprep.subr.bf16.mxu0 %v531
    %866 = vmatpush2.bf16.msra.mxu0 %v530
    %867 = vmatprep.subr.bf16.mxu0 %v528
    %868 = vmatpush2.bf16.msra.mxu0 %v527
    %869 = vmatprep.subr.bf16.mxu0 %v525
    %870 = vmatpush2.bf16.msra.mxu0 %v524
    %871 = vmatprep.subr.bf16.mxu0 %v522
    %872 = vmatpush2.bf16.msra.mxu0 %v521
    %873 = vmatprep.subr.bf16.mxu0 %v519
    %874 = vmatpush2.bf16.msra.mxu0 %v518
    %875 = vmatprep.mubr.bf16.mxu0 %v57
    %876 = vmatmul.mubr.bf16.gmra.mxu0 %v56
    %v877 = vpop.f32.mrf.mxu0
    %v878 = vadd.f32 %v837, %v877
    %v879 = vpop.f32.mrf.mxu0
    %v880 = vadd.f32 %v839, %v879
    %v881 = vpop.f32.mrf.mxu0
    %v882 = vpop.f32.mrf.mxu0
    %883 = vdwg.mxu0
    %884 = vmatprep.subr.bf16.mxu0 %v564
    %885 = vmatpush1.bf16.msra.mxu0 %v563
    %886 = vmatprep.subr.bf16.mxu0 %v561
    %887 = vmatpush1.bf16.msra.mxu0 %v560
    %888 = vmatprep.subr.bf16.mxu0 %v558
    %889 = vmatpush1.bf16.msra.mxu0 %v557
    %890 = vmatprep.subr.bf16.mxu0 %v555
    %891 = vmatpush1.bf16.msra.mxu0 %v554
    %892 = vmatprep.subr.bf16.mxu0 %v552
    %893 = vmatpush1.bf16.msra.mxu0 %v551
    %894 = vmatprep.subr.bf16.mxu0 %v549
    %895 = vmatpush1.bf16.msra.mxu0 %v548
    %896 = vmatprep.subr.bf16.mxu0 %v546
    %897 = vmatpush1.bf16.msra.mxu0 %v545
    %898 = vmatprep.subr.bf16.mxu0 %v543
    %899 = vmatpush1.bf16.msra.mxu0 %v542
    %900 = vmatprep.subr.bf16.mxu0 %v588
    %901 = vmatpush2.bf16.msra.mxu0 %v587
    %902 = vmatprep.subr.bf16.mxu0 %v585
    %903 = vmatpush2.bf16.msra.mxu0 %v584
    %904 = vmatprep.subr.bf16.mxu0 %v582
    %905 = vmatpush2.bf16.msra.mxu0 %v581
    %906 = vmatprep.subr.bf16.mxu0 %v579
    %907 = vmatpush2.bf16.msra.mxu0 %v578
    %908 = vmatprep.subr.bf16.mxu0 %v576
    %909 = vmatpush2.bf16.msra.mxu0 %v575
    %910 = vmatprep.subr.bf16.mxu0 %v573
    %911 = vmatpush2.bf16.msra.mxu0 %v572
    %912 = vmatprep.subr.bf16.mxu0 %v570
    %913 = vmatpush2.bf16.msra.mxu0 %v569
    %914 = vmatprep.subr.bf16.mxu0 %v567
    %915 = vmatpush2.bf16.msra.mxu0 %v566
    %916 = vmatprep.mubr.bf16.mxu0 %v59
    %917 = vmatmul.mubr.bf16.gmra.mxu0 %v58
    %v918 = vpop.f32.mrf.mxu0
    %v919 = vadd.f32 %v878, %v918
    %v920 = vpop.f32.mrf.mxu0
    %v921 = vadd.f32 %v880, %v920
    %v922 = vpop.f32.mrf.mxu0
    %v923 = vpop.f32.mrf.mxu0
    %924 = vdwg.mxu0
    %925 = vmatprep.subr.bf16.mxu0 %v612
    %926 = vmatpush1.bf16.msra.mxu0 %v611
    %927 = vmatprep.subr.bf16.mxu0 %v609
    %928 = vmatpush1.bf16.msra.mxu0 %v608
    %929 = vmatprep.subr.bf16.mxu0 %v606
    %930 = vmatpush1.bf16.msra.mxu0 %v605
    %931 = vmatprep.subr.bf16.mxu0 %v603
    %932 = vmatpush1.bf16.msra.mxu0 %v602
    %933 = vmatprep.subr.bf16.mxu0 %v600
    %934 = vmatpush1.bf16.msra.mxu0 %v599
    %935 = vmatprep.subr.bf16.mxu0 %v597
    %936 = vmatpush1.bf16.msra.mxu0 %v596
    %937 = vmatprep.subr.bf16.mxu0 %v594
    %938 = vmatpush1.bf16.msra.mxu0 %v593
    %939 = vmatprep.subr.bf16.mxu0 %v591
    %940 = vmatpush1.bf16.msra.mxu0 %v590
    %941 = vmatprep.subr.bf16.mxu0 %v636
    %942 = vmatpush2.bf16.msra.mxu0 %v635
    %943 = vmatprep.subr.bf16.mxu0 %v633
    %944 = vmatpush2.bf16.msra.mxu0 %v632
    %945 = vmatprep.subr.bf16.mxu0 %v630
    %946 = vmatpush2.bf16.msra.mxu0 %v629
    %947 = vmatprep.subr.bf16.mxu0 %v627
    %948 = vmatpush2.bf16.msra.mxu0 %v626
    %949 = vmatprep.subr.bf16.mxu0 %v624
    %950 = vmatpush2.bf16.msra.mxu0 %v623
    %951 = vmatprep.subr.bf16.mxu0 %v621
    %952 = vmatpush2.bf16.msra.mxu0 %v620
    %953 = vmatprep.subr.bf16.mxu0 %v618
    %954 = vmatpush2.bf16.msra.mxu0 %v617
    %955 = vmatprep.subr.bf16.mxu0 %v615
    %956 = vmatpush2.bf16.msra.mxu0 %v614
    %957 = vmatprep.mubr.bf16.mxu0 %v61
    %958 = vmatmul.mubr.bf16.gmra.mxu0 %v60
    %v959 = vpop.f32.mrf.mxu0
    %v960 = vadd.f32 %v919, %v959
    %v961 = vpop.f32.mrf.mxu0
    %v962 = vadd.f32 %v921, %v961
    %v963 = vpop.f32.mrf.mxu0
    %v964 = vpop.f32.mrf.mxu0
    %965 = vdwg.mxu0
    %966 = vmatprep.subr.bf16.mxu0 0
    %967 = vmatpush1.bf16.msra.mxu0 %v277
    %968 = vmatprep.subr.bf16.mxu0 0
    %969 = vmatpush1.bf16.msra.mxu0 %v274
    %970 = vmatprep.subr.bf16.mxu0 0
    %971 = vmatpush1.bf16.msra.mxu0 %v271
    %972 = vmatprep.subr.bf16.mxu0 0
    %973 = vmatpush1.bf16.msra.mxu0 %v268
    %974 = vmatprep.subr.bf16.mxu0 0
    %975 = vmatpush1.bf16.msra.mxu0 %v265
    %976 = vmatprep.subr.bf16.mxu0 0
    %977 = vmatpush1.bf16.msra.mxu0 %v262
    %978 = vmatprep.subr.bf16.mxu0 0
    %979 = vmatpush1.bf16.msra.mxu0 %v259
    %980 = vmatprep.subr.bf16.mxu0 0
    %981 = vmatpush1.bf16.msra.mxu0 %v256
    %982 = vmatprep.subr.bf16.mxu0 0
    %983 = vmatpush2.bf16.msra.mxu0 %v301
    %984 = vmatprep.subr.bf16.mxu0 0
    %985 = vmatpush2.bf16.msra.mxu0 %v298
    %986 = vmatprep.subr.bf16.mxu0 0
    %987 = vmatpush2.bf16.msra.mxu0 %v295
    %988 = vmatprep.subr.bf16.mxu0 0
    %989 = vmatpush2.bf16.msra.mxu0 %v292
    %990 = vmatprep.subr.bf16.mxu0 0
    %991 = vmatpush2.bf16.msra.mxu0 %v289
    %992 = vmatprep.subr.bf16.mxu0 0
    %993 = vmatpush2.bf16.msra.mxu0 %v286
    %994 = vmatprep.subr.bf16.mxu0 0
    %995 = vmatpush2.bf16.msra.mxu0 %v283
    %996 = vmatprep.subr.bf16.mxu0 0
    %997 = vmatpush2.bf16.msra.mxu0 %v280
    %998 = vmatprep.mubr.bf16.mxu0 %v47
    %999 = vmatmul.mubr.bf16.gmra.mxu0 %v46
    %v1000 = vpop.f32.mrf.mxu0
    %v1001 = vadd.f32 0.0, %v1000
    %v1002 = vpop.f32.mrf.mxu0
    %v1003 = vpop.f32.mrf.mxu0
    %v1004 = vpop.f32.mrf.mxu0
    %1005 = vdwg.mxu0
    %1006 = vmatprep.subr.bf16.mxu0 0
    %1007 = vmatpush1.bf16.msra.mxu0 %v325
    %1008 = vmatprep.subr.bf16.mxu0 0
    %1009 = vmatpush1.bf16.msra.mxu0 %v322
    %1010 = vmatprep.subr.bf16.mxu0 0
    %1011 = vmatpush1.bf16.msra.mxu0 %v319
    %1012 = vmatprep.subr.bf16.mxu0 0
    %1013 = vmatpush1.bf16.msra.mxu0 %v316
    %1014 = vmatprep.subr.bf16.mxu0 0
    %1015 = vmatpush1.bf16.msra.mxu0 %v313
    %1016 = vmatprep.subr.bf16.mxu0 0
    %1017 = vmatpush1.bf16.msra.mxu0 %v310
    %1018 = vmatprep.subr.bf16.mxu0 0
    %1019 = vmatpush1.bf16.msra.mxu0 %v307
    %1020 = vmatprep.subr.bf16.mxu0 0
    %1021 = vmatpush1.bf16.msra.mxu0 %v304
    %1022 = vmatprep.subr.bf16.mxu0 0
    %1023 = vmatpush2.bf16.msra.mxu0 %v349
    %1024 = vmatprep.subr.bf16.mxu0 0
    %1025 = vmatpush2.bf16.msra.mxu0 %v346
    %1026 = vmatprep.subr.bf16.mxu0 0
    %1027 = vmatpush2.bf16.msra.mxu0 %v343
    %1028 = vmatprep.subr.bf16.mxu0 0
    %1029 = vmatpush2.bf16.msra.mxu0 %v340
    %1030 = vmatprep.subr.bf16.mxu0 0
    %1031 = vmatpush2.bf16.msra.mxu0 %v337
    %1032 = vmatprep.subr.bf16.mxu0 0
    %1033 = vmatpush2.bf16.msra.mxu0 %v334
    %1034 = vmatprep.subr.bf16.mxu0 0
    %1035 = vmatpush2.bf16.msra.mxu0 %v331
    %1036 = vmatprep.subr.bf16.mxu0 0
    %1037 = vmatpush2.bf16.msra.mxu0 %v328
    %1038 = vmatprep.mubr.bf16.mxu0 %v49
    %1039 = vmatmul.mubr.bf16.gmra.mxu0 %v48
    %v1040 = vpop.f32.mrf.mxu0
    %v1041 = vadd.f32 %v1001, %v1040
    %v1042 = vpop.f32.mrf.mxu0
    %v1043 = vpop.f32.mrf.mxu0
    %v1044 = vpop.f32.mrf.mxu0
    %1045 = vdwg.mxu0
    %1046 = vmatprep.subr.bf16.mxu0 0
    %1047 = vmatpush1.bf16.msra.mxu0 %v373
    %1048 = vmatprep.subr.bf16.mxu0 0
    %1049 = vmatpush1.bf16.msra.mxu0 %v370
    %1050 = vmatprep.subr.bf16.mxu0 0
    %1051 = vmatpush1.bf16.msra.mxu0 %v367
    %1052 = vmatprep.subr.bf16.mxu0 0
    %1053 = vmatpush1.bf16.msra.mxu0 %v364
    %1054 = vmatprep.subr.bf16.mxu0 0
    %1055 = vmatpush1.bf16.msra.mxu0 %v361
    %1056 = vmatprep.subr.bf16.mxu0 0
    %1057 = vmatpush1.bf16.msra.mxu0 %v358
    %1058 = vmatprep.subr.bf16.mxu0 0
    %1059 = vmatpush1.bf16.msra.mxu0 %v355
    %1060 = vmatprep.subr.bf16.mxu0 0
    %1061 = vmatpush1.bf16.msra.mxu0 %v352
    %1062 = vmatprep.subr.bf16.mxu0 0
    %1063 = vmatpush2.bf16.msra.mxu0 %v397
    %1064 = vmatprep.subr.bf16.mxu0 0
    %1065 = vmatpush2.bf16.msra.mxu0 %v394
    %1066 = vmatprep.subr.bf16.mxu0 0
    %1067 = vmatpush2.bf16.msra.mxu0 %v391
    %1068 = vmatprep.subr.bf16.mxu0 0
    %1069 = vmatpush2.bf16.msra.mxu0 %v388
    %1070 = vmatprep.subr.bf16.mxu0 0
    %1071 = vmatpush2.bf16.msra.mxu0 %v385
    %1072 = vmatprep.subr.bf16.mxu0 0
    %1073 = vmatpush2.bf16.msra.mxu0 %v382
    %1074 = vmatprep.subr.bf16.mxu0 0
    %1075 = vmatpush2.bf16.msra.mxu0 %v379
    %1076 = vmatprep.subr.bf16.mxu0 0
    %1077 = vmatpush2.bf16.msra.mxu0 %v376
    %1078 = vmatprep.mubr.bf16.mxu0 %v51
    %1079 = vmatmul.mubr.bf16.gmra.mxu0 %v50
    %v1080 = vpop.f32.mrf.mxu0
    %v1081 = vadd.f32 %v1041, %v1080
    %v1082 = vpop.f32.mrf.mxu0
    %v1083 = vpop.f32.mrf.mxu0
    %v1084 = vpop.f32.mrf.mxu0
    %1085 = vdwg.mxu0
    %1086 = vmatprep.subr.bf16.mxu0 0
    %1087 = vmatpush1.bf16.msra.mxu0 %v421
    %1088 = vmatprep.subr.bf16.mxu0 0
    %1089 = vmatpush1.bf16.msra.mxu0 %v418
    %1090 = vmatprep.subr.bf16.mxu0 0
    %1091 = vmatpush1.bf16.msra.mxu0 %v415
    %1092 = vmatprep.subr.bf16.mxu0 0
    %1093 = vmatpush1.bf16.msra.mxu0 %v412
    %1094 = vmatprep.subr.bf16.mxu0 0
    %1095 = vmatpush1.bf16.msra.mxu0 %v409
    %1096 = vmatprep.subr.bf16.mxu0 0
    %1097 = vmatpush1.bf16.msra.mxu0 %v406
    %1098 = vmatprep.subr.bf16.mxu0 0
    %1099 = vmatpush1.bf16.msra.mxu0 %v403
    %1100 = vmatprep.subr.bf16.mxu0 0
    %1101 = vmatpush1.bf16.msra.mxu0 %v400
    %1102 = vmatprep.subr.bf16.mxu0 0
    %1103 = vmatpush2.bf16.msra.mxu0 %v445
    %1104 = vmatprep.subr.bf16.mxu0 0
    %1105 = vmatpush2.bf16.msra.mxu0 %v442
    %1106 = vmatprep.subr.bf16.mxu0 0
    %1107 = vmatpush2.bf16.msra.mxu0 %v439
    %1108 = vmatprep.subr.bf16.mxu0 0
    %1109 = vmatpush2.bf16.msra.mxu0 %v436
    %1110 = vmatprep.subr.bf16.mxu0 0
    %1111 = vmatpush2.bf16.msra.mxu0 %v433
    %1112 = vmatprep.subr.bf16.mxu0 0
    %1113 = vmatpush2.bf16.msra.mxu0 %v430
    %1114 = vmatprep.subr.bf16.mxu0 0
    %1115 = vmatpush2.bf16.msra.mxu0 %v427
    %1116 = vmatprep.subr.bf16.mxu0 0
    %1117 = vmatpush2.bf16.msra.mxu0 %v424
    %1118 = vmatprep.mubr.bf16.mxu0 %v53
    %1119 = vmatmul.mubr.bf16.gmra.mxu0 %v52
    %v1120 = vpop.f32.mrf.mxu0
    %v1121 = vadd.f32 %v1081, %v1120
    %v1122 = vpop.f32.mrf.mxu0
    %v1123 = vpop.f32.mrf.mxu0
    %v1124 = vpop.f32.mrf.mxu0
    %1125 = vdwg.mxu0
    %1126 = vmatprep.subr.bf16.mxu0 0
    %1127 = vmatpush1.bf16.msra.mxu0 %v469
    %1128 = vmatprep.subr.bf16.mxu0 0
    %1129 = vmatpush1.bf16.msra.mxu0 %v466
    %1130 = vmatprep.subr.bf16.mxu0 0
    %1131 = vmatpush1.bf16.msra.mxu0 %v463
    %1132 = vmatprep.subr.bf16.mxu0 0
    %1133 = vmatpush1.bf16.msra.mxu0 %v460
    %1134 = vmatprep.subr.bf16.mxu0 0
    %1135 = vmatpush1.bf16.msra.mxu0 %v457
    %1136 = vmatprep.subr.bf16.mxu0 0
    %1137 = vmatpush1.bf16.msra.mxu0 %v454
    %1138 = vmatprep.subr.bf16.mxu0 0
    %1139 = vmatpush1.bf16.msra.mxu0 %v451
    %1140 = vmatprep.subr.bf16.mxu0 0
    %1141 = vmatpush1.bf16.msra.mxu0 %v448
    %1142 = vmatprep.subr.bf16.mxu0 0
    %1143 = vmatpush2.bf16.msra.mxu0 %v493
    %1144 = vmatprep.subr.bf16.mxu0 0
    %1145 = vmatpush2.bf16.msra.mxu0 %v490
    %1146 = vmatprep.subr.bf16.mxu0 0
    %1147 = vmatpush2.bf16.msra.mxu0 %v487
    %1148 = vmatprep.subr.bf16.mxu0 0
    %1149 = vmatpush2.bf16.msra.mxu0 %v484
    %1150 = vmatprep.subr.bf16.mxu0 0
    %1151 = vmatpush2.bf16.msra.mxu0 %v481
    %1152 = vmatprep.subr.bf16.mxu0 0
    %1153 = vmatpush2.bf16.msra.mxu0 %v478
    %1154 = vmatprep.subr.bf16.mxu0 0
    %1155 = vmatpush2.bf16.msra.mxu0 %v475
    %1156 = vmatprep.subr.bf16.mxu0 0
    %1157 = vmatpush2.bf16.msra.mxu0 %v472
    %1158 = vmatprep.mubr.bf16.mxu0 %v55
    %1159 = vmatmul.mubr.bf16.gmra.mxu0 %v54
    %v1160 = vpop.f32.mrf.mxu0
    %v1161 = vadd.f32 %v1121, %v1160
    %v1162 = vpop.f32.mrf.mxu0
    %v1163 = vpop.f32.mrf.mxu0
    %v1164 = vpop.f32.mrf.mxu0
    %1165 = vdwg.mxu0
    %1166 = vmatprep.subr.bf16.mxu0 0
    %1167 = vmatpush1.bf16.msra.mxu0 %v517
    %1168 = vmatprep.subr.bf16.mxu0 0
    %1169 = vmatpush1.bf16.msra.mxu0 %v514
    %1170 = vmatprep.subr.bf16.mxu0 0
    %1171 = vmatpush1.bf16.msra.mxu0 %v511
    %1172 = vmatprep.subr.bf16.mxu0 0
    %1173 = vmatpush1.bf16.msra.mxu0 %v508
    %1174 = vmatprep.subr.bf16.mxu0 0
    %1175 = vmatpush1.bf16.msra.mxu0 %v505
    %1176 = vmatprep.subr.bf16.mxu0 0
    %1177 = vmatpush1.bf16.msra.mxu0 %v502
    %1178 = vmatprep.subr.bf16.mxu0 0
    %1179 = vmatpush1.bf16.msra.mxu0 %v499
    %1180 = vmatprep.subr.bf16.mxu0 0
    %1181 = vmatpush1.bf16.msra.mxu0 %v496
    %1182 = vmatprep.subr.bf16.mxu0 0
    %1183 = vmatpush2.bf16.msra.mxu0 %v541
    %1184 = vmatprep.subr.bf16.mxu0 0
    %1185 = vmatpush2.bf16.msra.mxu0 %v538
    %1186 = vmatprep.subr.bf16.mxu0 0
    %1187 = vmatpush2.bf16.msra.mxu0 %v535
    %1188 = vmatprep.subr.bf16.mxu0 0
    %1189 = vmatpush2.bf16.msra.mxu0 %v532
    %1190 = vmatprep.subr.bf16.mxu0 0
    %1191 = vmatpush2.bf16.msra.mxu0 %v529
    %1192 = vmatprep.subr.bf16.mxu0 0
    %1193 = vmatpush2.bf16.msra.mxu0 %v526
    %1194 = vmatprep.subr.bf16.mxu0 0
    %1195 = vmatpush2.bf16.msra.mxu0 %v523
    %1196 = vmatprep.subr.bf16.mxu0 0
    %1197 = vmatpush2.bf16.msra.mxu0 %v520
    %1198 = vmatprep.mubr.bf16.mxu0 %v57
    %1199 = vmatmul.mubr.bf16.gmra.mxu0 %v56
    %v1200 = vpop.f32.mrf.mxu0
    %v1201 = vadd.f32 %v1161, %v1200
    %v1202 = vpop.f32.mrf.mxu0
    %v1203 = vpop.f32.mrf.mxu0
    %v1204 = vpop.f32.mrf.mxu0
    %1205 = vdwg.mxu0
    %1206 = vmatprep.subr.bf16.mxu0 0
    %1207 = vmatpush1.bf16.msra.mxu0 %v565
    %1208 = vmatprep.subr.bf16.mxu0 0
    %1209 = vmatpush1.bf16.msra.mxu0 %v562
    %1210 = vmatprep.subr.bf16.mxu0 0
    %1211 = vmatpush1.bf16.msra.mxu0 %v559
    %1212 = vmatprep.subr.bf16.mxu0 0
    %1213 = vmatpush1.bf16.msra.mxu0 %v556
    %1214 = vmatprep.subr.bf16.mxu0 0
    %1215 = vmatpush1.bf16.msra.mxu0 %v553
    %1216 = vmatprep.subr.bf16.mxu0 0
    %1217 = vmatpush1.bf16.msra.mxu0 %v550
    %1218 = vmatprep.subr.bf16.mxu0 0
    %1219 = vmatpush1.bf16.msra.mxu0 %v547
    %1220 = vmatprep.subr.bf16.mxu0 0
    %1221 = vmatpush1.bf16.msra.mxu0 %v544
    %1222 = vmatprep.subr.bf16.mxu0 0
    %1223 = vmatpush2.bf16.msra.mxu0 %v589
    %1224 = vmatprep.subr.bf16.mxu0 0
    %1225 = vmatpush2.bf16.msra.mxu0 %v586
    %1226 = vmatprep.subr.bf16.mxu0 0
    %1227 = vmatpush2.bf16.msra.mxu0 %v583
    %1228 = vmatprep.subr.bf16.mxu0 0
    %1229 = vmatpush2.bf16.msra.mxu0 %v580
    %1230 = vmatprep.subr.bf16.mxu0 0
    %1231 = vmatpush2.bf16.msra.mxu0 %v577
    %1232 = vmatprep.subr.bf16.mxu0 0
    %1233 = vmatpush2.bf16.msra.mxu0 %v574
    %1234 = vmatprep.subr.bf16.mxu0 0
    %1235 = vmatpush2.bf16.msra.mxu0 %v571
    %1236 = vmatprep.subr.bf16.mxu0 0
    %1237 = vmatpush2.bf16.msra.mxu0 %v568
    %1238 = vmatprep.mubr.bf16.mxu0 %v59
    %1239 = vmatmul.mubr.bf16.gmra.mxu0 %v58
    %v1240 = vpop.f32.mrf.mxu0
    %v1241 = vadd.f32 %v1201, %v1240
    %v1242 = vpop.f32.mrf.mxu0
    %v1243 = vpop.f32.mrf.mxu0
    %v1244 = vpop.f32.mrf.mxu0
    %1245 = vdwg.mxu0
    %1246 = vmatprep.subr.bf16.mxu0 0
    %1247 = vmatpush1.bf16.msra.mxu0 %v613
    %1248 = vmatprep.subr.bf16.mxu0 0
    %1249 = vmatpush1.bf16.msra.mxu0 %v610
    %1250 = vmatprep.subr.bf16.mxu0 0
    %1251 = vmatpush1.bf16.msra.mxu0 %v607
    %1252 = vmatprep.subr.bf16.mxu0 0
    %1253 = vmatpush1.bf16.msra.mxu0 %v604
    %1254 = vmatprep.subr.bf16.mxu0 0
    %1255 = vmatpush1.bf16.msra.mxu0 %v601
    %1256 = vmatprep.subr.bf16.mxu0 0
    %1257 = vmatpush1.bf16.msra.mxu0 %v598
    %1258 = vmatprep.subr.bf16.mxu0 0
    %1259 = vmatpush1.bf16.msra.mxu0 %v595
    %1260 = vmatprep.subr.bf16.mxu0 0
    %1261 = vmatpush1.bf16.msra.mxu0 %v592
    %1262 = vmatprep.subr.bf16.mxu0 0
    %1263 = vmatpush2.bf16.msra.mxu0 %v637
    %1264 = vmatprep.subr.bf16.mxu0 0
    %1265 = vmatpush2.bf16.msra.mxu0 %v634
    %1266 = vmatprep.subr.bf16.mxu0 0
    %1267 = vmatpush2.bf16.msra.mxu0 %v631
    %1268 = vmatprep.subr.bf16.mxu0 0
    %1269 = vmatpush2.bf16.msra.mxu0 %v628
    %1270 = vmatprep.subr.bf16.mxu0 0
    %1271 = vmatpush2.bf16.msra.mxu0 %v625
    %1272 = vmatprep.subr.bf16.mxu0 0
    %1273 = vmatpush2.bf16.msra.mxu0 %v622
    %1274 = vmatprep.subr.bf16.mxu0 0
    %1275 = vmatpush2.bf16.msra.mxu0 %v619
    %1276 = vmatprep.subr.bf16.mxu0 0
    %1277 = vmatpush2.bf16.msra.mxu0 %v616
    %1278 = vmatprep.mubr.bf16.mxu0 %v61
    %1279 = vmatmul.mubr.bf16.gmra.mxu0 %v60
    %v1280 = vpop.f32.mrf.mxu0
    %v1281 = vadd.f32 %v1241, %v1280
    %v1282 = vpop.f32.mrf.mxu0
    %v1283 = vpop.f32.mrf.mxu0
    %v1284 = vpop.f32.mrf.mxu0
    %1285 = vdwg.mxu0
    %v1286 = vrot.slane %v960, 4
    %v1287 = vadd.f32 %v960, %v1286
    %v1288 = vrot.slane %v1287, 2
    %v1289 = vadd.f32 %v1287, %v1288
    %v1290 = vrot.slane %v1289, 1
    %v1291 = vadd.f32 %v1289, %v1290
    %v1292 = vrot.slane %v962, 4
    %v1293 = vadd.f32 %v962, %v1292
    %v1294 = vrot.slane %v1293, 2
    %v1295 = vadd.f32 %v1293, %v1294
    %v1296 = vrot.slane %v1295, 1
    %v1297 = vadd.f32 %v1295, %v1296
    %v1298 = vrot.slane %v1281, 4
    %v1299 = vadd.f32 %v1281, %v1298
    %v1300 = vrot.slane %v1299, 2
    %v1301 = vadd.f32 %v1299, %v1300
    %v1302 = vrot.slane %v1301, 1
    %v1303 = vadd.f32 %v1301, %v1302
    %v1304 = vrcp.pop 8.0
    %v1305 = vmul.f32 %v1291, %v1304
    %v1306 = vmul.f32 %v1297, %v1304
    %v1307 = vmul.f32 %v1303, %v1304
    %v1308 = vsub.f32 %v960, %v1305
    %v1309 = vsub.f32 %v962, %v1306
    %v1310 = vsub.f32 %v1281, %v1307
    %v1311 = vmul.f32 %v1308, %v1308
    %v1312 = vmul.f32 %v1309, %v1309
    %v1313 = vmul.f32 %v1310, %v1310
    %v1314 = vrot.slane %v1311, 4
    %v1315 = vadd.f32 %v1311, %v1314
    %v1316 = vrot.slane %v1315, 2
    %v1317 = vadd.f32 %v1315, %v1316
    %v1318 = vrot.slane %v1317, 1
    %v1319 = vadd.f32 %v1317, %v1318
    %v1320 = vrot.slane %v1312, 4
    %v1321 = vadd.f32 %v1312, %v1320
    %v1322 = vrot.slane %v1321, 2
    %v1323 = vadd.f32 %v1321, %v1322
    %v1324 = vrot.slane %v1323, 1
    %v1325 = vadd.f32 %v1323, %v1324
    %v1326 = vrot.slane %v1313, 4
    %v1327 = vadd.f32 %v1313, %v1326
    %v1328 = vrot.slane %v1327, 2
    %v1329 = vadd.f32 %v1327, %v1328
    %v1330 = vrot.slane %v1329, 1
    %v1331 = vadd.f32 %v1329, %v1330
    %v1332 = vmul.f32 %v1319, %v1304
    %v1333 = vmul.f32 %v1325, %v1304
    %v1334 = vmul.f32 %v1331, %v1304
    %v1335 = vld [vmem:[%s2] ss:$4 sm:$0x7]
    %s1336 = scalar_lea.vmem %s2, 1
    %v1337 = vld [vmem:[%s1336] ss:$4 sm:$0x7]
    %s1338 = scalar_lea.vmem %s2, 2
    %v1339 = vld [vmem:[%s1338] ss:$4 sm:$0x7]
    %v1341 = vlaneseq
    %v1342 = vshrl.u32 %v1341, 7
    %v1343 = vsub.s32 0, %v1342
    %v1344 = vrot.slane %v1335, %v1343
    %v1345 = vlaneseq
    %v1346 = vshrl.u32 %v1345, 7
    %v1347 = vsub.s32 1, %v1346
    %v1348 = vrot.slane %v1335, %v1347
    %v1349 = vlaneseq
    %v1350 = vshrl.u32 %v1349, 7
    %v1351 = vsub.s32 2, %v1350
    %v1352 = vrot.slane %v1335, %v1351
    %v1356 = vadd.f32 %v1332, %v1344
    %v1357 = vadd.f32 %v1333, %v1348
    %v1358 = vadd.f32 %v1334, %v1352
    %v1359 = vrsqrt.pop %v1356
    %v1360 = vrsqrt.pop %v1357
    %v1361 = vrsqrt.pop %v1358
    %v1365 = vcombine.low %v1359, %v1360
    %v1367 = vunpack.c.l.s4 1966171168
    %v1368 = vunpack.c.0.s8 %v1367
    %v1369 = vlaneseq
    %v1370 = vshrl.u32 %v1369, 7
    %v1371 = vsub.s32 %v1368, %v1370
    %v1372 = vrot.slane %v1365, %v1371
    %v1374 = vunpack.c.l.s4 1966171168
    %v1375 = vunpack.c.0.s8 %v1374
    %v1376 = vlaneseq
    %v1377 = vshrl.u32 %v1376, 7
    %v1378 = vsub.s32 %v1375, %v1377
    %v1379 = vrot.slane %v1361, %v1378
    %v1380 = vcombine.low %v1372, %v1379
    %v1382 = vunpack.c.l.s4 1966171168
    %v1383 = vunpack.c.0.s8 %v1382
    %v1384 = vlaneseq
    %v1385 = vshrl.u32 %v1384, 7
    %v1386 = vsub.s32 %v1383, %v1385
    %v1387 = vrot.slane %v1380, %v1386
    %v1389 = vmul.f32 %v1337, %v1387
    %v1391 = vlaneseq
    %v1392 = vshrl.u32 %v1391, 7
    %v1393 = vsub.s32 0, %v1392
    %v1394 = vrot.slane %v1389, %v1393
    %v1395 = vlaneseq
    %v1396 = vshrl.u32 %v1395, 7
    %v1397 = vsub.s32 1, %v1396
    %v1398 = vrot.slane %v1389, %v1397
    %v1399 = vlaneseq
    %v1400 = vshrl.u32 %v1399, 7
    %v1401 = vsub.s32 2, %v1400
    %v1402 = vrot.slane %v1389, %v1401
    %v1406 = vmul.f32 %v1308, %v1394
    %v1407 = vmul.f32 %v1309, %v1398
    %v1408 = vmul.f32 %v1310, %v1402
    %v1410 = vlaneseq
    %v1411 = vshrl.u32 %v1410, 7
    %v1412 = vsub.s32 0, %v1411
    %v1413 = vrot.slane %v1339, %v1412
    %v1414 = vlaneseq
    %v1415 = vshrl.u32 %v1414, 7
    %v1416 = vsub.s32 1, %v1415
    %v1417 = vrot.slane %v1339, %v1416
    %v1418 = vlaneseq
    %v1419 = vshrl.u32 %v1418, 7
    %v1420 = vsub.s32 2, %v1419
    %v1421 = vrot.slane %v1339, %v1420
    %v1425 = vadd.f32 %v1406, %v1413
    %v1426 = vadd.f32 %v1407, %v1417
    %v1427 = vadd.f32 %v1408, %v1421
    %1428 = vst [vmem:[#allocation5] sm:$0xff] %v1425
    %1429 = vst [vmem:[#allocation5 + $0x8] sm:$0xff] %v1426
    %1430 = vst [vmem:[#allocation5 + $0x10] sm:$0xff] %v1427
    // Predicated region
    $region18: #{_encoder_head.1} parent=1 // pred_check
      _
    $region19: #{_encoder_head.1} parent=1 // pred_check_branch
      %1432 = sbr.rel (0) target = $region21
    $region20: #{_encoder_head.1} parent=1 // pred_region
      %s1434 = ssub.s32 384, 384
      %1435 = vsyncadd [#allocation4], %s1434
      %s1437 = sshll.u32 [#allocation5], 4
      %s1438 = int_to_ptr.vmem [resolvable:$true] %s1437
      %1440 = dma.vmem_to_hbm [thread:$0]  %s1438, 384, %s3, [#allocation4]
    $region21: #{_encoder_head.1} parent=1 // pred_fallthru
      _
    // Predicated region
    $region22: #{_encoder_head.1} parent=1 // pred_check
      _
    $region23: #{_encoder_head.1} parent=1 // pred_check_branch
      %1442 = sbr.rel (0) target = $region25
    $region24: #{_encoder_head.1} parent=1 // pred_region
      %1443 = dma.done [#allocation4], 384
    $region25: #{_encoder_head.1} parent=1 // pred_fallthru
      _
    %1444 = vsyncpa [#allocation3], 1
    %1445 = vsyncpa [#allocation4], 1

</llo_original>
